<compile_context>
chip_gen: v5e
topology: v5e:2x2
jax: 0.10.0
libtpu: 0.0.40
codegen_flags: <defaults>
</compile_context>

<pallas_src>
import jax
import jax.numpy as jnp
from jax import lax
from jax.experimental import pallas as pl
from jax.experimental.pallas import tpu as pltpu

_EPS = 1e-5          # nn.BatchNorm2d default
LANE = 128           # TPU lane width: conv outputs padded to this (lane-dense)


# ----------------------------- small helpers -----------------------------

def _ceil_to(x, m):
    return (x + m - 1) // m * m


def _phase_layout(x_nhwc, pad, stride):
    """Spatial zero-pad + stride-phase decomposition, done ONCE and in bf16
    with the real channel count (no 128-channel HBM blow-up).
    Returns (N*stride*stride, Hq, Wq, C); phase (a, b) holds xp[:, a::s, b::s]."""
    x = x_nhwc.astype(jnp.bfloat16)
    n, h, w, c = x.shape
    xp = jnp.pad(x, ((0, 0), (pad, pad), (pad, pad), (0, 0)))
    hp, wp = h + 2 * pad, w + 2 * pad
    hq, wq = -(-hp // stride), -(-wp // stride)
    xp = jnp.pad(xp, ((0, 0), (0, hq * stride - hp), (0, wq * stride - wp), (0, 0)))
    xph = xp.reshape(n, hq, stride, wq, stride, c)
    xph = jnp.transpose(xph, (0, 2, 4, 1, 3, 5))          # (n, a, b, i, j, c)
    return xph.reshape(n * stride * stride, hq, wq, c)


def _prep_w(w_oihw, cin_p, cout_p):
    """OIHW conv weight -> (ks*ks, cin_p, cout_p) zero-padded bf16 tap mats."""
    co, ci, kh, kw = w_oihw.shape
    w = jnp.transpose(w_oihw, (2, 3, 1, 0)).reshape(kh * kw, ci, co)
    w = jnp.pad(w, ((0, 0), (0, cin_p - ci), (0, cout_p - co)))
    return w.astype(jnp.bfloat16)


# ----------------------------- Pallas kernels -----------------------------

def conv_bn_stats(xph, w, ws=None, *, ks, stride, n, ho, wo):
    """ks x ks conv (stride s, spatial pad already applied) + fused per-image
    BN partial statistics.  If `ws` is given, the 1x1 stride-s shortcut conv
    (and its statistics) is fused into the same kernel, reusing the image
    already resident in VMEM.

    xph : (n*s*s, hq, wq, cin)   bf16 phase-decomposed input
    w   : (ks*ks, cin, cout_p)   bf16 tap weights
    ws  : (1, cin, cout_p)       bf16 shortcut weight, or None
    Returns y:(n*ho*wo, cout_p) bf16, st:(n, 2, cout_p) f32 [, ys, sts].
    """
    s = stride
    ss = s * s
    phs, hq, wq, cin = xph.shape
    assert phs == n * ss
    cout_p = w.shape[-1]
    hw = ho * wo
    with_sc = ws is not None
    # Fold all taps along the contraction axis into ONE K = ks*ks*cin matmul
    # when the tap slabs are lane-aligned (cin % 128 == 0): fills the 256-wide
    # MXU on v6e/v7x and leaves a single matmul (no per-tap VMEM accumulator
    # round-trips).  Tiny-cin first layers keep per-tap K=cin matmuls.
    fold = (cin % LANE == 0)

    def windows(x_ref):
        for kh in range(ks):
            for kw in range(ks):
                win = x_ref[(kh % s) * s + (kw % s),
                            kh // s: kh // s + ho,
                            kw // s: kw // s + wo, :]
                yield win.reshape(hw, cin)

    def body(x_ref, w_ref, *refs):
        if with_sc:
            ws_ref, y_ref, st_ref, ys_ref, sts_ref = refs
        else:
            y_ref, st_ref = refs

        if fold:
            patch = jnp.concatenate(list(windows(x_ref)), axis=-1)   # (hw, K)
            acc = jnp.dot(patch, w_ref[...].reshape(ks * ks * cin, cout_p),
                          preferred_element_type=jnp.float32)
        else:
            acc = None
            for t, win in enumerate(windows(x_ref)):
                d = jnp.dot(win, w_ref[t], preferred_element_type=jnp.float32)
                acc = d if acc is None else acc + d

        y_ref[...] = acc.astype(y_ref.dtype)
        # fused epilogue: per-image partial sum / sum-of-squares (f32)
        st_ref[0] = jnp.concatenate(
            [jnp.sum(acc, axis=0, keepdims=True),
             jnp.sum(acc * acc, axis=0, keepdims=True)], axis=0)

        if with_sc:
            # 1x1 stride-s shortcut conv: x[i*s, j*s] == padded[1+i*s, 1+j*s]
            ph = (1 % s) * s + (1 % s)
            off = 1 // s
            win11 = x_ref[ph, off:off + ho, off:off + wo, :].reshape(hw, cin)
            acs = jnp.dot(win11, ws_ref[0], preferred_element_type=jnp.float32)
            ys_ref[...] = acs.astype(ys_ref.dtype)
            sts_ref[0] = jnp.concatenate(
                [jnp.sum(acs, axis=0, keepdims=True),
                 jnp.sum(acs * acs, axis=0, keepdims=True)], axis=0)

    in_specs = [pl.BlockSpec((ss, hq, wq, cin), lambda i: (i, 0, 0, 0)),
                pl.BlockSpec((ks * ks, cin, cout_p), lambda i: (0, 0, 0))]
    out_shape = [jax.ShapeDtypeStruct((n * hw, cout_p), jnp.bfloat16),
                 jax.ShapeDtypeStruct((n, 2, cout_p), jnp.float32)]
    out_specs = [pl.BlockSpec((hw, cout_p), lambda i: (i, 0)),
                 pl.BlockSpec((1, 2, cout_p), lambda i: (i, 0, 0))]
    args = [xph, w]
    if with_sc:
        in_specs.append(pl.BlockSpec((1, cin, cout_p), lambda i: (0, 0, 0)))
        out_shape += [jax.ShapeDtypeStruct((n * hw, cout_p), jnp.bfloat16),
                      jax.ShapeDtypeStruct((n, 2, cout_p), jnp.float32)]
        out_specs += [pl.BlockSpec((hw, cout_p), lambda i: (i, 0)),
                      pl.BlockSpec((1, 2, cout_p), lambda i: (i, 0, 0))]
        args.append(ws)

    return pl.pallas_call(
        body,
        out_shape=tuple(out_shape),
        grid=(n,),
        in_specs=in_specs,
        out_specs=tuple(out_specs),
        compiler_params=pltpu.CompilerParams(
            dimension_semantics=("parallel",),
            vmem_limit_bytes=32 * 1024 * 1024),
    )(*args)


def bn_relu_pad(y, scale, bias, *, n, ho, wo, pad=1):
    """BN affine (f32) + ReLU fused with producing the zero-padded bf16 NHWC
    activation that feeds the next 3x3 conv.  The spatial halo is padded
    in-register and the whole block is written once (no zero-then-overwrite,
    no sublane-offset masked interior stores)."""
    hw, cp = ho * wo, y.shape[-1]
    hp, wp = ho + 2 * pad, wo + 2 * pad

    def kernel(y_ref, s_ref, b_ref, o_ref):
        v = jnp.maximum(
            y_ref[...].astype(jnp.float32) * s_ref[...] + b_ref[...], 0.0)
        v = v.reshape(ho, wo, cp)
        zw = jnp.zeros((ho, pad, cp), jnp.float32)
        v = jnp.concatenate([zw, v, zw], axis=1)           # W halo
        zh = jnp.zeros((pad, wp, cp), jnp.float32)
        v = jnp.concatenate([zh, v, zh], axis=0)           # H halo
        o_ref[0] = v.astype(o_ref.dtype)                   # single dense store

    return pl.pallas_call(
        kernel,
        out_shape=jax.ShapeDtypeStruct((n, hp, wp, cp), jnp.bfloat16),
        grid=(n,),
        in_specs=[pl.BlockSpec((hw, cp), lambda i: (i, 0)),
                  pl.BlockSpec((1, cp), lambda i: (0, 0)),
                  pl.BlockSpec((1, cp), lambda i: (0, 0))],
        out_specs=pl.BlockSpec((1, hp, wp, cp), lambda i: (i, 0, 0, 0)),
        compiler_params=pltpu.CompilerParams(
            dimension_semantics=("parallel",)),
    )(y, scale, bias)


def bn_add_relu(y, scale, bias, res, res_scale=None, res_bias=None):
    """Fused BN2 affine (+ optional shortcut-BN affine) + residual add + ReLU.
    Elementwise math in f32 (v5e-friendly); inputs may be bf16.  cdiv grid
    (masked partial last tile) so tail rows are never dropped."""
    m, cp = y.shape
    tm = min(2048, _ceil_to(m, 8))
    with_affine = res_scale is not None

    if with_affine:
        def kernel(y_ref, s_ref, b_ref, r_ref, rs_ref, rb_ref, o_ref):
            o_ref[...] = jnp.maximum(
                y_ref[...].astype(jnp.float32) * s_ref[...] + b_ref[...]
                + r_ref[...].astype(jnp.float32) * rs_ref[...] + rb_ref[...],
                0.0)
        extra_in = [res_scale, res_bias]
        extra_specs = [pl.BlockSpec((1, cp), lambda i: (0, 0)),
                       pl.BlockSpec((1, cp), lambda i: (0, 0))]
    else:
        def kernel(y_ref, s_ref, b_ref, r_ref, o_ref):
            o_ref[...] = jnp.maximum(
                y_ref[...].astype(jnp.float32) * s_ref[...] + b_ref[...]
                + r_ref[...].astype(jnp.float32), 0.0)
        extra_in, extra_specs = [], []

    return pl.pallas_call(
        kernel,
        out_shape=jax.ShapeDtypeStruct((m, cp), jnp.float32),
        grid=(pl.cdiv(m, tm),),
        in_specs=[pl.BlockSpec((tm, cp), lambda i: (i, 0)),
                  pl.BlockSpec((1, cp), lambda i: (0, 0)),
                  pl.BlockSpec((1, cp), lambda i: (0, 0)),
                  pl.BlockSpec((tm, cp), lambda i: (i, 0))] + extra_specs,
        out_specs=pl.BlockSpec((tm, cp), lambda i: (i, 0)),
        compiler_params=pltpu.CompilerParams(
            dimension_semantics=("parallel",)),
    )(y, scale, bias, res, *extra_in)


# ----------------------------- JAX glue -----------------------------

def _scale_bias(stats, count, gamma, beta, cp):
    """Reduce per-image partial stats (f32) -> training-mode BN scale / bias."""
    g = jnp.pad(gamma, (0, cp - gamma.shape[0]))
    b = jnp.pad(beta, (0, cp - beta.shape[0]))
    tot = jnp.sum(stats, axis=0)                    # (2, cp): sum, sumsq
    mean = tot[0] / count
    var = tot[1] / count - mean * mean              # biased var (torch train BN)
    scale = g / jnp.sqrt(var + _EPS)
    bias = b - mean * scale
    return scale[None, :], bias[None, :]


def init_basic_block_params(key, in_channels, out_channels, stride=1):
    k1, k2, k3 = jax.random.split(key, 3)
    w1 = jax.random.normal(k1, (out_channels, in_channels, 3, 3),
                           jnp.float32) * (2.0 / (in_channels * 9)) ** 0.5
    w2 = jax.random.normal(k2, (out_channels, out_channels, 3, 3),
                           jnp.float32) * (2.0 / (out_channels * 9)) ** 0.5
    ar = jnp.arange(out_channels, dtype=jnp.float32)
    params = dict(
        stride=stride,
        conv1_w=w1,
        bn1_gamma=1.0 + 0.10 * ar, bn1_beta=0.05 * ar,
        conv2_w=w2,
        bn2_gamma=1.0 - 0.05 * ar, bn2_beta=-0.02 * ar,
    )
    if stride != 1 or in_channels != out_channels:
        ws = jax.random.normal(k3, (out_channels, in_channels, 1, 1),
                               jnp.float32) * (2.0 / in_channels) ** 0.5
        params.update(shortcut_w=ws,
                      bns_gamma=1.0 + 0.03 * ar, bns_beta=0.01 * ar)
    return params


def basic_block_forward(params, x_nchw):
    x = jnp.transpose(x_nchw, (0, 2, 3, 1)).astype(jnp.float32)     # NHWC f32
    n, h, w, cin = x.shape
    stride = params["stride"]
    cout = params["conv1_w"].shape[0]
    cout_p = _ceil_to(cout, LANE)

    ho = (h + 2 - 3) // stride + 1
    wo = (w + 2 - 3) // stride + 1
    m = n * ho * wo
    has_sc = "shortcut_w" in params

    # single bf16 phase-decomposed copy of x feeds conv1 AND the 1x1 shortcut
    xph = _phase_layout(x, pad=1, stride=stride)
    w1 = _prep_w(params["conv1_w"], cin, cout_p)
    if has_sc:
        ws = _prep_w(params["shortcut_w"], cin, cout_p)
        y1, st1, ys, sts = conv_bn_stats(xph, w1, ws, ks=3, stride=stride,
                                         n=n, ho=ho, wo=wo)
    else:
        y1, st1 = conv_bn_stats(xph, w1, None, ks=3, stride=stride,
                                n=n, ho=ho, wo=wo)
    s1, b1 = _scale_bias(st1, m, params["bn1_gamma"], params["bn1_beta"], cout_p)

    # BN1 affine + ReLU fused with zero-padding -> bf16 conv2 input
    a1p = bn_relu_pad(y1, s1, b1, n=n, ho=ho, wo=wo, pad=1)

    # conv2 (3x3, stride 1) with fused BN2 stats; K folded to ks*ks*128
    w2 = _prep_w(params["conv2_w"], cout_p, cout_p)
    y2, st2 = conv_bn_stats(a1p, w2, None, ks=3, stride=1, n=n, ho=ho, wo=wo)
    s2, b2 = _scale_bias(st2, m, params["bn2_gamma"], params["bn2_beta"], cout_p)

    if has_sc:
        ss_, bs_ = _scale_bias(sts, m, params["bns_gamma"], params["bns_beta"],
                               cout_p)
        out = bn_add_relu(y2, s2, b2, ys, ss_, bs_)
    else:
        # identity shortcut stays f32 (exactly matches torch's f32 add)
        res = jnp.pad(x, ((0, 0), (0, 0), (0, 0), (0, cout_p - cin)))
        out = bn_add_relu(y2, s2, b2, res.reshape(m, cout_p))

    out = out.reshape(n, ho, wo, cout_p)[..., :cout]
    return jnp.transpose(out, (0, 3, 1, 2))                         # NCHW


# ----------------------------- pure-JAX reference -----------------------------

def _ref_forward(params, x_nchw):
    """Reference with the same precision policy as the kernels: bf16 MXU
    operands + f32 accumulation, bf16 HBM intermediates, f32 BN stats/affine."""
    f32 = jnp.float32
    r = lambda t: t.astype(jnp.bfloat16).astype(f32)     # bf16 HBM round-trip

    def conv(xx, wgt, stride, pad):
        return lax.conv_general_dilated(
            xx.astype(jnp.bfloat16), wgt.astype(jnp.bfloat16),
            (stride, stride), [(pad, pad), (pad, pad)],
            dimension_numbers=("NCHW", "OIHW", "NCHW"),
            preferred_element_type=f32)

    def bn(y_stats, y_apply, gamma, beta):
        mean = jnp.mean(y_stats, axis=(0, 2, 3))
        var = jnp.mean(y_stats * y_stats, axis=(0, 2, 3)) - mean * mean
        scale = gamma / jnp.sqrt(var + _EPS)
        bias = beta - mean * scale
        return scale[None, :, None, None] * y_apply + bias[None, :, None, None]

    y1 = conv(x_nchw, params["conv1_w"], params["stride"], 1)
    a1 = r(jax.nn.relu(bn(y1, r(y1), params["bn1_gamma"], params["bn1_beta"])))
    y2 = conv(a1, params["conv2_w"], 1, 1)
    out = bn(y2, r(y2), params["bn2_gamma"], params["bn2_beta"])
    if "shortcut_w" in params:
        ys = conv(x_nchw, params["shortcut_w"], params["stride"], 0)
        sc = bn(ys, r(ys), params["bns_gamma"], params["bns_beta"])
    else:
        sc = x_nchw
    return jax.nn.relu(out + sc)


# ----------------------------- main -----------------------------

if __name__ == "__main__":
    key = jax.random.PRNGKey(0)
    kx, kp1, kp2 = jax.random.split(key, 3)
    x = jax.random.normal(kx, (2, 4, 16, 16), jnp.float32)   # NCHW like PyTorch

    # case 1: projection shortcut (stride=2, 4 -> 8 channels)
    params_a = init_basic_block_params(kp1, 4, 8, stride=2)
    out_a = jax.block_until_ready(basic_block_forward(params_a, x))
    ref_a = _ref_forward(params_a, x)
    assert out_a.shape == (2, 8, 8, 8), out_a.shape
    err_a = float(jnp.max(jnp.abs(out_a - ref_a)))
    assert err_a < 1e-2, err_a

    # case 2: identity shortcut (stride=1, 4 -> 4 channels)
    params_b = init_basic_block_params(kp2, 4, 4, stride=1)
    out_b = jax.block_until_ready(basic_block_forward(params_b, x))
    ref_b = _ref_forward(params_b, x)
    assert out_b.shape == (2, 4, 16, 16), out_b.shape
    err_b = float(jnp.max(jnp.abs(out_b - ref_b)))
    assert err_b < 1e-2, err_b

    print("KERNEL_OK")
</pallas_src>

<mosaic_0001>
module attributes {stable_mosaic.version = 11 : i64} {
  func.func @body(%arg0: i32, %arg1: memref<4x9x9x4xbf16, #tpu.memory_space<vmem>>, %arg2: memref<9x4x128xbf16, #tpu.memory_space<vmem>>, %arg3: memref<1x4x128xbf16, #tpu.memory_space<vmem>>, %arg4: memref<64x128xbf16, #tpu.memory_space<vmem>>, %arg5: memref<1x2x128xf32, #tpu.memory_space<vmem>>, %arg6: memref<64x128xbf16, #tpu.memory_space<vmem>>, %arg7: memref<1x2x128xf32, #tpu.memory_space<vmem>>) attributes {dimension_semantics = [#tpu.dimension_semantics<parallel>], iteration_bounds = array<i64: 2>, scalar_prefetch = 0 : i64, scratch_operands = 0 : i64, tpu.core_type = #tpu.core_type<tc>, window_params = [{transform_indices = @transform_0, window_bounds = array<i64: 4, 9, 9, 4>}, {pipeline_mode = #tpu.pipeline_mode<synchronous>, transform_indices = @transform_1, window_bounds = array<i64: 9, 4, 128>}, {pipeline_mode = #tpu.pipeline_mode<synchronous>, transform_indices = @transform_2, window_bounds = array<i64: 1, 4, 128>}, {transform_indices = @transform_3, window_bounds = array<i64: 64, 128>}, {transform_indices = @transform_4, window_bounds = array<i64: 1, 2, 128>}, {transform_indices = @transform_5, window_bounds = array<i64: 64, 128>}, {transform_indices = @transform_6, window_bounds = array<i64: 1, 2, 128>}]} {
    %c0 = arith.constant 0 : index
    %c0_0 = arith.constant 0 : index
    %c0_1 = arith.constant 0 : index
    %c0_2 = arith.constant 0 : index
    %0 = vector.load %arg1[%c0, %c0_0, %c0_1, %c0_2] : memref<4x9x9x4xbf16, #tpu.memory_space<vmem>>, vector<1x8x8x4xbf16>
    %1 = vector.shape_cast %0 : vector<1x8x8x4xbf16> to vector<8x8x4xbf16>
    %2 = vector.shape_cast %1 : vector<8x8x4xbf16> to vector<64x4xbf16>
    %c0_3 = arith.constant 0 : index
    %c0_4 = arith.constant 0 : index
    %c0_5 = arith.constant 0 : index
    %3 = vector.load %arg2[%c0_3, %c0_4, %c0_5] : memref<9x4x128xbf16, #tpu.memory_space<vmem>>, vector<1x4x128xbf16>
    %4 = vector.shape_cast %3 : vector<1x4x128xbf16> to vector<4x128xbf16>
    %cst = arith.constant dense<0.000000e+00> : vector<64x128xf32>
    %5 = tpu.matmul %2, %4, %cst {dimension_numbers = #tpu.dot_dimension_numbers<[1], [0], [0], [1], [0, 0, 1, 1], [], []>} : vector<64x4xbf16>, vector<4x128xbf16>, vector<64x128xf32> -> vector<64x128xf32>
    %c1 = arith.constant 1 : index
    %c0_6 = arith.constant 0 : index
    %c0_7 = arith.constant 0 : index
    %c0_8 = arith.constant 0 : index
    %6 = vector.load %arg1[%c1, %c0_6, %c0_7, %c0_8] : memref<4x9x9x4xbf16, #tpu.memory_space<vmem>>, vector<1x8x8x4xbf16>
    %7 = vector.shape_cast %6 : vector<1x8x8x4xbf16> to vector<8x8x4xbf16>
    %8 = vector.shape_cast %7 : vector<8x8x4xbf16> to vector<64x4xbf16>
    %c1_9 = arith.constant 1 : index
    %c0_10 = arith.constant 0 : index
    %c0_11 = arith.constant 0 : index
    %9 = vector.load %arg2[%c1_9, %c0_10, %c0_11] : memref<9x4x128xbf16, #tpu.memory_space<vmem>>, vector<1x4x128xbf16>
    %10 = vector.shape_cast %9 : vector<1x4x128xbf16> to vector<4x128xbf16>
    %cst_12 = arith.constant dense<0.000000e+00> : vector<64x128xf32>
    %11 = tpu.matmul %8, %10, %cst_12 {dimension_numbers = #tpu.dot_dimension_numbers<[1], [0], [0], [1], [0, 0, 1, 1], [], []>} : vector<64x4xbf16>, vector<4x128xbf16>, vector<64x128xf32> -> vector<64x128xf32>
    %12 = arith.addf %5, %11 : vector<64x128xf32>
    %c0_13 = arith.constant 0 : index
    %c0_14 = arith.constant 0 : index
    %c1_15 = arith.constant 1 : index
    %c0_16 = arith.constant 0 : index
    %13 = vector.load %arg1[%c0_13, %c0_14, %c1_15, %c0_16] : memref<4x9x9x4xbf16, #tpu.memory_space<vmem>>, vector<1x8x8x4xbf16>
    %14 = vector.shape_cast %13 : vector<1x8x8x4xbf16> to vector<8x8x4xbf16>
    %15 = vector.shape_cast %14 : vector<8x8x4xbf16> to vector<64x4xbf16>
    %c2 = arith.constant 2 : index
    %c0_17 = arith.constant 0 : index
    %c0_18 = arith.constant 0 : index
    %16 = vector.load %arg2[%c2, %c0_17, %c0_18] : memref<9x4x128xbf16, #tpu.memory_space<vmem>>, vector<1x4x128xbf16>
    %17 = vector.shape_cast %16 : vector<1x4x128xbf16> to vector<4x128xbf16>
    %cst_19 = arith.constant dense<0.000000e+00> : vector<64x128xf32>
    %18 = tpu.matmul %15, %17, %cst_19 {dimension_numbers = #tpu.dot_dimension_numbers<[1], [0], [0], [1], [0, 0, 1, 1], [], []>} : vector<64x4xbf16>, vector<4x128xbf16>, vector<64x128xf32> -> vector<64x128xf32>
    %19 = arith.addf %12, %18 : vector<64x128xf32>
    %c2_20 = arith.constant 2 : index
    %c0_21 = arith.constant 0 : index
    %c0_22 = arith.constant 0 : index
    %c0_23 = arith.constant 0 : index
    %20 = vector.load %arg1[%c2_20, %c0_21, %c0_22, %c0_23] : memref<4x9x9x4xbf16, #tpu.memory_space<vmem>>, vector<1x8x8x4xbf16>
    %21 = vector.shape_cast %20 : vector<1x8x8x4xbf16> to vector<8x8x4xbf16>
    %22 = vector.shape_cast %21 : vector<8x8x4xbf16> to vector<64x4xbf16>
    %c3 = arith.constant 3 : index
    %c0_24 = arith.constant 0 : index
    %c0_25 = arith.constant 0 : index
    %23 = vector.load %arg2[%c3, %c0_24, %c0_25] : memref<9x4x128xbf16, #tpu.memory_space<vmem>>, vector<1x4x128xbf16>
    %24 = vector.shape_cast %23 : vector<1x4x128xbf16> to vector<4x128xbf16>
    %cst_26 = arith.constant dense<0.000000e+00> : vector<64x128xf32>
    %25 = tpu.matmul %22, %24, %cst_26 {dimension_numbers = #tpu.dot_dimension_numbers<[1], [0], [0], [1], [0, 0, 1, 1], [], []>} : vector<64x4xbf16>, vector<4x128xbf16>, vector<64x128xf32> -> vector<64x128xf32>
    %26 = arith.addf %19, %25 : vector<64x128xf32>
    %c3_27 = arith.constant 3 : index
    %c0_28 = arith.constant 0 : index
    %c0_29 = arith.constant 0 : index
    %c0_30 = arith.constant 0 : index
    %27 = vector.load %arg1[%c3_27, %c0_28, %c0_29, %c0_30] : memref<4x9x9x4xbf16, #tpu.memory_space<vmem>>, vector<1x8x8x4xbf16>
    %28 = vector.shape_cast %27 : vector<1x8x8x4xbf16> to vector<8x8x4xbf16>
    %29 = vector.shape_cast %28 : vector<8x8x4xbf16> to vector<64x4xbf16>
    %c4 = arith.constant 4 : index
    %c0_31 = arith.constant 0 : index
    %c0_32 = arith.constant 0 : index
    %30 = vector.load %arg2[%c4, %c0_31, %c0_32] : memref<9x4x128xbf16, #tpu.memory_space<vmem>>, vector<1x4x128xbf16>
    %31 = vector.shape_cast %30 : vector<1x4x128xbf16> to vector<4x128xbf16>
    %cst_33 = arith.constant dense<0.000000e+00> : vector<64x128xf32>
    %32 = tpu.matmul %29, %31, %cst_33 {dimension_numbers = #tpu.dot_dimension_numbers<[1], [0], [0], [1], [0, 0, 1, 1], [], []>} : vector<64x4xbf16>, vector<4x128xbf16>, vector<64x128xf32> -> vector<64x128xf32>
    %33 = arith.addf %26, %32 : vector<64x128xf32>
    %c2_34 = arith.constant 2 : index
    %c0_35 = arith.constant 0 : index
    %c1_36 = arith.constant 1 : index
    %c0_37 = arith.constant 0 : index
    %34 = vector.load %arg1[%c2_34, %c0_35, %c1_36, %c0_37] : memref<4x9x9x4xbf16, #tpu.memory_space<vmem>>, vector<1x8x8x4xbf16>
    %35 = vector.shape_cast %34 : vector<1x8x8x4xbf16> to vector<8x8x4xbf16>
    %36 = vector.shape_cast %35 : vector<8x8x4xbf16> to vector<64x4xbf16>
    %c5 = arith.constant 5 : index
    %c0_38 = arith.constant 0 : index
    %c0_39 = arith.constant 0 : index
    %37 = vector.load %arg2[%c5, %c0_38, %c0_39] : memref<9x4x128xbf16, #tpu.memory_space<vmem>>, vector<1x4x128xbf16>
    %38 = vector.shape_cast %37 : vector<1x4x128xbf16> to vector<4x128xbf16>
    %cst_40 = arith.constant dense<0.000000e+00> : vector<64x128xf32>
    %39 = tpu.matmul %36, %38, %cst_40 {dimension_numbers = #tpu.dot_dimension_numbers<[1], [0], [0], [1], [0, 0, 1, 1], [], []>} : vector<64x4xbf16>, vector<4x128xbf16>, vector<64x128xf32> -> vector<64x128xf32>
    %40 = arith.addf %33, %39 : vector<64x128xf32>
    %c0_41 = arith.constant 0 : index
    %c1_42 = arith.constant 1 : index
    %c0_43 = arith.constant 0 : index
    %c0_44 = arith.constant 0 : index
    %41 = vector.load %arg1[%c0_41, %c1_42, %c0_43, %c0_44] : memref<4x9x9x4xbf16, #tpu.memory_space<vmem>>, vector<1x8x8x4xbf16>
    %42 = vector.shape_cast %41 : vector<1x8x8x4xbf16> to vector<8x8x4xbf16>
    %43 = vector.shape_cast %42 : vector<8x8x4xbf16> to vector<64x4xbf16>
    %c6 = arith.constant 6 : index
    %c0_45 = arith.constant 0 : index
    %c0_46 = arith.constant 0 : index
    %44 = vector.load %arg2[%c6, %c0_45, %c0_46] : memref<9x4x128xbf16, #tpu.memory_space<vmem>>, vector<1x4x128xbf16>
    %45 = vector.shape_cast %44 : vector<1x4x128xbf16> to vector<4x128xbf16>
    %cst_47 = arith.constant dense<0.000000e+00> : vector<64x128xf32>
    %46 = tpu.matmul %43, %45, %cst_47 {dimension_numbers = #tpu.dot_dimension_numbers<[1], [0], [0], [1], [0, 0, 1, 1], [], []>} : vector<64x4xbf16>, vector<4x128xbf16>, vector<64x128xf32> -> vector<64x128xf32>
    %47 = arith.addf %40, %46 : vector<64x128xf32>
    %c1_48 = arith.constant 1 : index
    %c1_49 = arith.constant 1 : index
    %c0_50 = arith.constant 0 : index
    %c0_51 = arith.constant 0 : index
    %48 = vector.load %arg1[%c1_48, %c1_49, %c0_50, %c0_51] : memref<4x9x9x4xbf16, #tpu.memory_space<vmem>>, vector<1x8x8x4xbf16>
    %49 = vector.shape_cast %48 : vector<1x8x8x4xbf16> to vector<8x8x4xbf16>
    %50 = vector.shape_cast %49 : vector<8x8x4xbf16> to vector<64x4xbf16>
    %c7 = arith.constant 7 : index
    %c0_52 = arith.constant 0 : index
    %c0_53 = arith.constant 0 : index
    %51 = vector.load %arg2[%c7, %c0_52, %c0_53] : memref<9x4x128xbf16, #tpu.memory_space<vmem>>, vector<1x4x128xbf16>
    %52 = vector.shape_cast %51 : vector<1x4x128xbf16> to vector<4x128xbf16>
    %cst_54 = arith.constant dense<0.000000e+00> : vector<64x128xf32>
    %53 = tpu.matmul %50, %52, %cst_54 {dimension_numbers = #tpu.dot_dimension_numbers<[1], [0], [0], [1], [0, 0, 1, 1], [], []>} : vector<64x4xbf16>, vector<4x128xbf16>, vector<64x128xf32> -> vector<64x128xf32>
    %54 = arith.addf %47, %53 : vector<64x128xf32>
    %c0_55 = arith.constant 0 : index
    %c1_56 = arith.constant 1 : index
    %c1_57 = arith.constant 1 : index
    %c0_58 = arith.constant 0 : index
    %55 = vector.load %arg1[%c0_55, %c1_56, %c1_57, %c0_58] : memref<4x9x9x4xbf16, #tpu.memory_space<vmem>>, vector<1x8x8x4xbf16>
    %56 = vector.shape_cast %55 : vector<1x8x8x4xbf16> to vector<8x8x4xbf16>
    %57 = vector.shape_cast %56 : vector<8x8x4xbf16> to vector<64x4xbf16>
    %c8 = arith.constant 8 : index
    %c0_59 = arith.constant 0 : index
    %c0_60 = arith.constant 0 : index
    %58 = vector.load %arg2[%c8, %c0_59, %c0_60] : memref<9x4x128xbf16, #tpu.memory_space<vmem>>, vector<1x4x128xbf16>
    %59 = vector.shape_cast %58 : vector<1x4x128xbf16> to vector<4x128xbf16>
    %cst_61 = arith.constant dense<0.000000e+00> : vector<64x128xf32>
    %60 = tpu.matmul %57, %59, %cst_61 {dimension_numbers = #tpu.dot_dimension_numbers<[1], [0], [0], [1], [0, 0, 1, 1], [], []>} : vector<64x4xbf16>, vector<4x128xbf16>, vector<64x128xf32> -> vector<64x128xf32>
    %61 = arith.addf %54, %60 : vector<64x128xf32>
    %62 = arith.truncf %61 : vector<64x128xf32> to vector<64x128xbf16>
    %c0_62 = arith.constant 0 : index
    %c0_63 = arith.constant 0 : index
    %63 = vector.load %arg4[%c0_62, %c0_63] : memref<64x128xbf16, #tpu.memory_space<vmem>>, vector<64x128xbf16>
    tpu.vector_store %arg4[%c0_62, %c0_63], %62 {strides = array<i32>} : memref<64x128xbf16, #tpu.memory_space<vmem>>, vector<64x128xbf16>,
    %cst_64 = arith.constant dense<0.000000e+00> : vector<128xf32>
    %64 = vector.multi_reduction <add>, %61, %cst_64 [0] : vector<64x128xf32> to vector<128xf32>
    %65 = vector.shape_cast %64 : vector<128xf32> to vector<1x128xf32>
    %66 = arith.mulf %61, %61 : vector<64x128xf32>
    %cst_65 = arith.constant dense<0.000000e+00> : vector<128xf32>
    %67 = vector.multi_reduction <add>, %66, %cst_65 [0] : vector<64x128xf32> to vector<128xf32>
    %68 = vector.shape_cast %67 : vector<128xf32> to vector<1x128xf32>
    %69 = tpu.concatenate %65, %68 in 0 : vector<1x128xf32>, vector<1x128xf32> -> vector<2x128xf32>
    %c0_66 = arith.constant 0 : index
    %c0_67 = arith.constant 0 : index
    %c0_68 = arith.constant 0 : index
    %70 = vector.load %arg5[%c0_66, %c0_67, %c0_68] : memref<1x2x128xf32, #tpu.memory_space<vmem>>, vector<1x2x128xf32>
    %71 = vector.shape_cast %70 : vector<1x2x128xf32> to vector<2x128xf32>
    %72 = vector.shape_cast %69 : vector<2x128xf32> to vector<1x2x128xf32>
    tpu.vector_store %arg5[%c0_66, %c0_67, %c0_68], %72 {strides = array<i32>} : memref<1x2x128xf32, #tpu.memory_space<vmem>>, vector<1x2x128xf32>,
    %c3_69 = arith.constant 3 : index
    %c0_70 = arith.constant 0 : index
    %c0_71 = arith.constant 0 : index
    %c0_72 = arith.constant 0 : index
    %73 = vector.load %arg1[%c3_69, %c0_70, %c0_71, %c0_72] : memref<4x9x9x4xbf16, #tpu.memory_space<vmem>>, vector<1x8x8x4xbf16>
    %74 = vector.shape_cast %73 : vector<1x8x8x4xbf16> to vector<8x8x4xbf16>
    %75 = vector.shape_cast %74 : vector<8x8x4xbf16> to vector<64x4xbf16>
    %c0_73 = arith.constant 0 : index
    %c0_74 = arith.constant 0 : index
    %c0_75 = arith.constant 0 : index
    %76 = vector.load %arg3[%c0_73, %c0_74, %c0_75] : memref<1x4x128xbf16, #tpu.memory_space<vmem>>, vector<1x4x128xbf16>
    %77 = vector.shape_cast %76 : vector<1x4x128xbf16> to vector<4x128xbf16>
    %cst_76 = arith.constant dense<0.000000e+00> : vector<64x128xf32>
    %78 = tpu.matmul %75, %77, %cst_76 {dimension_numbers = #tpu.dot_dimension_numbers<[1], [0], [0], [1], [0, 0, 1, 1], [], []>} : vector<64x4xbf16>, vector<4x128xbf16>, vector<64x128xf32> -> vector<64x128xf32>
    %79 = arith.truncf %78 : vector<64x128xf32> to vector<64x128xbf16>
    %c0_77 = arith.constant 0 : index
    %c0_78 = arith.constant 0 : index
    %80 = vector.load %arg6[%c0_77, %c0_78] : memref<64x128xbf16, #tpu.memory_space<vmem>>, vector<64x128xbf16>
    tpu.vector_store %arg6[%c0_77, %c0_78], %79 {strides = array<i32>} : memref<64x128xbf16, #tpu.memory_space<vmem>>, vector<64x128xbf16>,
    %cst_79 = arith.constant dense<0.000000e+00> : vector<128xf32>
    %81 = vector.multi_reduction <add>, %78, %cst_79 [0] : vector<64x128xf32> to vector<128xf32>
    %82 = vector.shape_cast %81 : vector<128xf32> to vector<1x128xf32>
    %83 = arith.mulf %78, %78 : vector<64x128xf32>
    %cst_80 = arith.constant dense<0.000000e+00> : vector<128xf32>
    %84 = vector.multi_reduction <add>, %83, %cst_80 [0] : vector<64x128xf32> to vector<128xf32>
    %85 = vector.shape_cast %84 : vector<128xf32> to vector<1x128xf32>
    %86 = tpu.concatenate %82, %85 in 0 : vector<1x128xf32>, vector<1x128xf32> -> vector<2x128xf32>
    %c0_81 = arith.constant 0 : index
    %c0_82 = arith.constant 0 : index
    %c0_83 = arith.constant 0 : index
    %87 = vector.load %arg7[%c0_81, %c0_82, %c0_83] : memref<1x2x128xf32, #tpu.memory_space<vmem>>, vector<1x2x128xf32>
    %88 = vector.shape_cast %87 : vector<1x2x128xf32> to vector<2x128xf32>
    %89 = vector.shape_cast %86 : vector<2x128xf32> to vector<1x2x128xf32>
    tpu.vector_store %arg7[%c0_81, %c0_82, %c0_83], %89 {strides = array<i32>} : memref<1x2x128xf32, #tpu.memory_space<vmem>>, vector<1x2x128xf32>,
    return
  }
  func.func @transform_0(%arg0: i32) -> (i32, i32, i32, i32) {
    %c0_i32 = arith.constant 0 : i32
    %c0_i32_0 = arith.constant 0 : i32
    %c0_i32_1 = arith.constant 0 : i32
    %c0_i32_2 = arith.constant 0 : i32
    return %arg0, %c0_i32, %c0_i32_0, %c0_i32_1 : i32, i32, i32, i32
  }
  func.func @transform_1(%arg0: i32) -> (i32, i32, i32) {
    %c0_i32 = arith.constant 0 : i32
    %c0_i32_0 = arith.constant 0 : i32
    %c0_i32_1 = arith.constant 0 : i32
    %c0_i32_2 = arith.constant 0 : i32
    return %c0_i32, %c0_i32_0, %c0_i32_1 : i32, i32, i32
  }
  func.func @transform_2(%arg0: i32) -> (i32, i32, i32) {
    %c0_i32 = arith.constant 0 : i32
    %c0_i32_0 = arith.constant 0 : i32
    %c0_i32_1 = arith.constant 0 : i32
    %c0_i32_2 = arith.constant 0 : i32
    return %c0_i32, %c0_i32_0, %c0_i32_1 : i32, i32, i32
  }
  func.func @transform_3(%arg0: i32) -> (i32, i32) {
    %c0_i32 = arith.constant 0 : i32
    %c0_i32_0 = arith.constant 0 : i32
    return %arg0, %c0_i32 : i32, i32
  }
  func.func @transform_4(%arg0: i32) -> (i32, i32, i32) {
    %c0_i32 = arith.constant 0 : i32
    %c0_i32_0 = arith.constant 0 : i32
    %c0_i32_1 = arith.constant 0 : i32
    return %arg0, %c0_i32, %c0_i32_0 : i32, i32, i32
  }
  func.func @transform_5(%arg0: i32) -> (i32, i32) {
    %c0_i32 = arith.constant 0 : i32
    %c0_i32_0 = arith.constant 0 : i32
    return %arg0, %c0_i32 : i32, i32
  }
  func.func @transform_6(%arg0: i32) -> (i32, i32, i32) {
    %c0_i32 = arith.constant 0 : i32
    %c0_i32_0 = arith.constant 0 : i32
    %c0_i32_1 = arith.constant 0 : i32
    return %arg0, %c0_i32, %c0_i32_0 : i32, i32, i32
  }
}

</mosaic_0001>

<llo_original>
// kernel: tpu_custom_call.1
$region0: #{tpu_custom_call.1}
  #allocation0 [shape = 'u32[]', space=smem, size = 0x4, offset = 0x4, fixed_abs, tag = 'smem constant byte address 0x4 - core index']
  #allocation1 [shape = 'u32[72,128]{1,0:T(1,128)}', space=vmem, size = 0x9000, scoped, tag = 'internal scratch']
  %s0 = inlined_call_operand.vmem [shape: bf16[8,9,9,4], index: 0, kind: input, shape index: {}]
  %s1 = inlined_call_operand.vmem [shape: bf16[9,4,128], index: 1, kind: input, shape index: {}]
  %s2 = inlined_call_operand.vmem [shape: bf16[1,4,128], index: 2, kind: input, shape index: {}]
  %s3 = inlined_call_operand.hbm [shape: bf16[128,128], index: 3, kind: output, shape index: {0}]
  %s4 = inlined_call_operand.hbm [shape: f32[2,2,128], index: 4, kind: output, shape index: {1}]
  %s5 = inlined_call_operand.hbm [shape: bf16[128,128], index: 5, kind: output, shape index: {2}]
  %s6 = inlined_call_operand.hbm [shape: f32[2,2,128], index: 6, kind: output, shape index: {3}]
  %7 = xla_tuple %s3, %s4, %s5, %s6
  %s8 = sld [smem:[#allocation0]]
  $region69: #{tpu_custom_call.1} parent=0
    _
  %s10 = ssub.s32 1, %s8
  %s11 = scalar_select 0, %s10, %s8
  $region1: #{tpu_custom_call.1} parent=0
    #allocation2 [shape = 'u8[32768]{0}', space=vmem, size = 0x8000, scoped, tag = 'output window, operand 0']
    #allocation3 [shape = 's32[2]{0}', space=sflag, size = 0x8, scoped, tag = 'scoped memory for tpu_custom_call.1']
    #allocation4 [shape = 'u8[2048]{0}', space=vmem, size = 0x800, scoped, tag = 'output window, operand 1']
    #allocation5 [shape = 's32[2]{0}', space=sflag, size = 0x8, scoped, tag = 'scoped memory for tpu_custom_call.1']
    #allocation6 [shape = 'u8[32768]{0}', space=vmem, size = 0x8000, scoped, tag = 'output window, operand 2']
    #allocation7 [shape = 'u8[2048]{0}', space=vmem, size = 0x800, scoped, tag = 'output window, operand 3']
    #allocation8 [shape = 's32[2]{0}', space=sflag, size = 0x8, scoped, tag = 'scoped memory for tpu_custom_call.1']
    %12 = vsyncpa [#allocation3], 0
    %s13 = scalar_lea.sflag [#allocation3], 1
    %14 = vsyncpa %s13, 0
    %15 = vsyncpa [#allocation5], 0
    %s16 = scalar_lea.sflag [#allocation5], 1
    %17 = vsyncpa %s16, 0
    %18 = vsyncpa [#allocation8], 0
    %s19 = scalar_lea.sflag [#allocation8], 1
    %20 = vsyncpa %s19, 0
    loop: start=0, step=1, limit=4
    $region2: #{tpu_custom_call.1} parent=1 // loop_pre_header
      _
    $region3: #{tpu_custom_call.1} parent=1 // loop_header
      %s22 = sphi 0, %s26
      %p23 = scmp.ge.s32.totalorder %s22, 4
      %s32 = sphi 0, %s34
      %s35 = sphi 0, %s32
      %s36 = sphi 0, %s35
      %s52 = sphi 0, %s36
      %s56 = sphi 0, %s56
      %s58 = sphi 0, %s56
      %s59 = sphi 0, %s58
      %s73 = sphi 0, %s59
      %s77 = sphi 0, %s77
      %s79 = sphi 0, %s77
      %s80 = sphi 0, %s79
      %s94 = sphi 0, %s80
      %s100 = sphi 0, %s102
      %s103 = sphi 0, %s100
      %s104 = sphi 0, %s103
      %s120 = sphi 0, %s104
      %s126 = sphi 0, %s128
      %s129 = sphi 0, %s126
      %s130 = sphi 0, %s129
      %s146 = sphi 0, %s130
      %s152 = sphi 0, %s154
      %s155 = sphi 0, %s152
      %s156 = sphi 0, %s155
      %s172 = sphi 0, %s156
      %s178 = sphi 0, %s180
      %s181 = sphi 0, %s178
      %s182 = sphi 0, %s181
      %s198 = sphi 0, %s182
    $region4: #{tpu_custom_call.1} parent=1 // loop_header_branch
      %25 = sbr.rel (%p23) target = $region8
    $region5: #{tpu_custom_call.1} parent=1 // loop_body
      %s27 = ssub.s32 %s22, 1
      %s28 = ssub.s32 %s22, 2
      %s29 = sadd.s32 %s22, 1
      %s30 = ssub.s32 %s22, %s29
      %p31 = scmp.eq.s32.totalorder %s30, 0
      %s33 = sadd.s32 %s32, 1
      %s34 = scalar_select %p31, %s32, %s33
      %p37 = pneg %p31
      %p38 = scmp.eq.s32.totalorder %s22, 1
      %p39 = por %p37, %p38
      %p40 = scmp.ne.s32.totalorder %s32, %s35
      %p41 = scmp.eq.s32.totalorder %s22, 0
      %p42 = por %p40, %p41
      %p43 = scmp.ne.s32.totalorder %s32, %s35
      %p44 = scmp.eq.s32.totalorder %s27, 1
      %p45 = por %p43, %p44
      %p46 = scmp.ne.s32.totalorder %s35, %s36
      %p47 = scmp.eq.s32.totalorder %s27, 0
      %p48 = por %p46, %p47
      %p49 = scmp.ne.s32.totalorder %s35, %s36
      %p50 = scmp.eq.s32.totalorder %s28, 1
      %p51 = por %p49, %p50
      %p53 = scmp.ne.s32.totalorder %s36, %s52
      %p54 = scmp.eq.s32.totalorder %s28, 0
      %p55 = por %p53, %p54
      %s57 = sadd.s32 %s56, 1
      %p60 = scmp.eq.s32.totalorder %s22, 1
      %p61 = scmp.ne.s32.totalorder %s56, %s58
      %p62 = scmp.eq.s32.totalorder %s22, 0
      %p63 = por %p61, %p62
      %p64 = scmp.ne.s32.totalorder %s56, %s58
      %p65 = scmp.eq.s32.totalorder %s27, 1
      %p66 = por %p64, %p65
      %p67 = scmp.ne.s32.totalorder %s58, %s59
      %p68 = scmp.eq.s32.totalorder %s27, 0
      %p69 = por %p67, %p68
      %p70 = scmp.ne.s32.totalorder %s58, %s59
      %p71 = scmp.eq.s32.totalorder %s28, 1
      %p72 = por %p70, %p71
      %p74 = scmp.ne.s32.totalorder %s59, %s73
      %p75 = scmp.eq.s32.totalorder %s28, 0
      %p76 = por %p74, %p75
      %s78 = sadd.s32 %s77, 1
      %p81 = scmp.eq.s32.totalorder %s22, 1
      %p82 = scmp.ne.s32.totalorder %s77, %s79
      %p83 = scmp.eq.s32.totalorder %s22, 0
      %p84 = por %p82, %p83
      %p85 = scmp.ne.s32.totalorder %s77, %s79
      %p86 = scmp.eq.s32.totalorder %s27, 1
      %p87 = por %p85, %p86
      %p88 = scmp.ne.s32.totalorder %s79, %s80
      %p89 = scmp.eq.s32.totalorder %s27, 0
      %p90 = por %p88, %p89
      %p91 = scmp.ne.s32.totalorder %s79, %s80
      %p92 = scmp.eq.s32.totalorder %s28, 1
      %p93 = por %p91, %p92
      %p95 = scmp.ne.s32.totalorder %s80, %s94
      %p96 = scmp.eq.s32.totalorder %s28, 0
      %p97 = por %p95, %p96
      %s98 = ssub.s32 %s22, %s29
      %p99 = scmp.eq.s32.totalorder %s98, 0
      %s101 = sadd.s32 %s100, 1
      %s102 = scalar_select %p99, %s100, %s101
      %p105 = pneg %p99
      %p106 = scmp.eq.s32.totalorder %s22, 1
      %p107 = por %p105, %p106
      %p108 = scmp.ne.s32.totalorder %s100, %s103
      %p109 = scmp.eq.s32.totalorder %s22, 0
      %p110 = por %p108, %p109
      %p111 = scmp.ne.s32.totalorder %s100, %s103
      %p112 = scmp.eq.s32.totalorder %s27, 1
      %p113 = por %p111, %p112
      %p114 = scmp.ne.s32.totalorder %s103, %s104
      %p115 = scmp.eq.s32.totalorder %s27, 0
      %p116 = por %p114, %p115
      %p117 = scmp.ne.s32.totalorder %s103, %s104
      %p118 = scmp.eq.s32.totalorder %s28, 1
      %p119 = por %p117, %p118
      %p121 = scmp.ne.s32.totalorder %s104, %s120
      %p122 = scmp.eq.s32.totalorder %s28, 0
      %p123 = por %p121, %p122
      %s124 = ssub.s32 %s22, %s29
      %p125 = scmp.eq.s32.totalorder %s124, 0
      %s127 = sadd.s32 %s126, 1
      %s128 = scalar_select %p125, %s126, %s127
      %p131 = pneg %p125
      %p132 = scmp.eq.s32.totalorder %s22, 1
      %p133 = por %p131, %p132
      %p134 = scmp.ne.s32.totalorder %s126, %s129
      %p135 = scmp.eq.s32.totalorder %s22, 0
      %p136 = por %p134, %p135
      %p137 = scmp.ne.s32.totalorder %s126, %s129
      %p138 = scmp.eq.s32.totalorder %s27, 1
      %p139 = por %p137, %p138
      %p140 = scmp.ne.s32.totalorder %s129, %s130
      %p141 = scmp.eq.s32.totalorder %s27, 0
      %p142 = por %p140, %p141
      %p143 = scmp.ne.s32.totalorder %s129, %s130
      %p144 = scmp.eq.s32.totalorder %s28, 1
      %p145 = por %p143, %p144
      %p147 = scmp.ne.s32.totalorder %s130, %s146
      %p148 = scmp.eq.s32.totalorder %s28, 0
      %p149 = por %p147, %p148
      %s150 = ssub.s32 %s22, %s29
      %p151 = scmp.eq.s32.totalorder %s150, 0
      %s153 = sadd.s32 %s152, 1
      %s154 = scalar_select %p151, %s152, %s153
      %p157 = pneg %p151
      %p158 = scmp.eq.s32.totalorder %s22, 1
      %p159 = por %p157, %p158
      %p160 = scmp.ne.s32.totalorder %s152, %s155
      %p161 = scmp.eq.s32.totalorder %s22, 0
      %p162 = por %p160, %p161
      %p163 = scmp.ne.s32.totalorder %s152, %s155
      %p164 = scmp.eq.s32.totalorder %s27, 1
      %p165 = por %p163, %p164
      %p166 = scmp.ne.s32.totalorder %s155, %s156
      %p167 = scmp.eq.s32.totalorder %s27, 0
      %p168 = por %p166, %p167
      %p169 = scmp.ne.s32.totalorder %s155, %s156
      %p170 = scmp.eq.s32.totalorder %s28, 1
      %p171 = por %p169, %p170
      %p173 = scmp.ne.s32.totalorder %s156, %s172
      %p174 = scmp.eq.s32.totalorder %s28, 0
      %p175 = por %p173, %p174
      %s176 = ssub.s32 %s22, %s29
      %p177 = scmp.eq.s32.totalorder %s176, 0
      %s179 = sadd.s32 %s178, 1
      %s180 = scalar_select %p177, %s178, %s179
      %p183 = pneg %p177
      %p184 = scmp.eq.s32.totalorder %s22, 1
      %p185 = por %p183, %p184
      %p186 = scmp.ne.s32.totalorder %s178, %s181
      %p187 = scmp.eq.s32.totalorder %s22, 0
      %p188 = por %p186, %p187
      %p189 = scmp.ne.s32.totalorder %s178, %s181
      %p190 = scmp.eq.s32.totalorder %s27, 1
      %p191 = por %p189, %p190
      %p192 = scmp.ne.s32.totalorder %s181, %s182
      %p193 = scmp.eq.s32.totalorder %s27, 0
      %p194 = por %p192, %p193
      %p195 = scmp.ne.s32.totalorder %s181, %s182
      %p196 = scmp.eq.s32.totalorder %s28, 1
      %p197 = por %p195, %p196
      %p199 = scmp.ne.s32.totalorder %s182, %s198
      %p200 = scmp.eq.s32.totalorder %s28, 0
      %p201 = por %p199, %p200
      %p202 = scmp.le.s32.totalorder 1, %s22
      %p203 = scmp.lt.s32.totalorder %s22, 3
      %p204 = pnand %p202, %p203
      %p205 = pneg %p204
      // Predicated region
      $region9: #{tpu_custom_call.1} parent=5 // pred_check
        _
      $region10: #{tpu_custom_call.1} parent=5 // pred_check_branch
        %207 = sbr.rel (%p204) target = $region12
      $region11: #{tpu_custom_call.1} parent=5 // pred_region
        %s208 = ssub.s32 %s22, 1
        // Predicated region
        $region13: #{tpu_custom_call.1} parent=11 // pred_check
          %p209 = pneg %p69
        $region14: #{tpu_custom_call.1} parent=11 // pred_check_branch
          %211 = sbr.rel (%p209) target = $region16
        $region15: #{tpu_custom_call.1} parent=11 // pred_region
          _
        $region16: #{tpu_custom_call.1} parent=11 // pred_fallthru
          _
        // Predicated region
        $region17: #{tpu_custom_call.1} parent=11 // pred_check
          %p212 = pneg %p90
        $region18: #{tpu_custom_call.1} parent=11 // pred_check_branch
          %214 = sbr.rel (%p212) target = $region20
        $region19: #{tpu_custom_call.1} parent=11 // pred_region
          _
        $region20: #{tpu_custom_call.1} parent=11 // pred_fallthru
          _
      $region12: #{tpu_custom_call.1} parent=5 // pred_fallthru
        _
      %p215 = scmp.lt.s32.totalorder %s22, 2
      // Predicated region
      $region21: #{tpu_custom_call.1} parent=5 // pred_check
        %p216 = pneg %p215
      $region22: #{tpu_custom_call.1} parent=5 // pred_check_branch
        %218 = sbr.rel (%p216) target = $region24
      $region23: #{tpu_custom_call.1} parent=5 // pred_region
        // Predicated region
        $region25: #{tpu_custom_call.1} parent=23 // pred_check
          %p219 = pneg %p42
        $region26: #{tpu_custom_call.1} parent=23 // pred_check_branch
          %221 = sbr.rel (%p219) target = $region28
        $region27: #{tpu_custom_call.1} parent=23 // pred_region
          %s222 = smul.u32 4, %s22
          %p223 = scmp.lt.s32.totalorder %s222, 7
          %s224 = scalar_select %p223, %s222, 7
          %s225 = smul.addr %s224, 18
          %s226 = smul.addr %s225, 4
          %s227 = scalar_lea.vmem %s0, %s226
          %s228 = smul.u32 4, %s22
        $region28: #{tpu_custom_call.1} parent=23 // pred_fallthru
          _
      $region24: #{tpu_custom_call.1} parent=5 // pred_fallthru
        _
      %p229 = scmp.le.s32.totalorder 1, %s22
      %p230 = scmp.lt.s32.totalorder %s22, 3
      %p231 = pnand %p229, %p230
      %p232 = pneg %p231
      // Predicated region
      $region29: #{tpu_custom_call.1} parent=5 // pred_check
        _
      $region30: #{tpu_custom_call.1} parent=5 // pred_check_branch
        %234 = sbr.rel (%p231) target = $region32
      $region31: #{tpu_custom_call.1} parent=5 // pred_region
        %s235 = ssub.s32 %s22, 1
        %s236 = smul.u32 4, %s27
        %p237 = scmp.lt.s32.totalorder %s236, 7
        %s238 = scalar_select %p237, %s236, 7
        %s239 = smul.addr %s238, 18
        %s240 = smul.addr %s239, 4
        %s241 = scalar_lea.vmem %s0, %s240
        %p242 = pneg %p48
        %p243 = pneg %p45
        %p244 = pneg %p69
        %p245 = pneg %p66
        %p246 = pneg %p90
        %p247 = pneg %p87
        %p248 = pneg %p116
        %p249 = pneg %p113
        %s250 = sand.u32 %s103, 1
        %s251 = scalar_lea.sflag [#allocation3], %s250
        %s252 = sand.u32 %s103, 1
        %s253 = smul.addr %s252, 32
        %s254 = scalar_lea.vmem [#allocation2], %s253
        %p255 = pneg %p142
        %p256 = pneg %p139
        %s257 = sand.u32 %s27, 1
        %s258 = scalar_lea.sflag [#allocation5], %s257
        %s259 = sand.u32 %s129, 1
        %s260 = smul.addr %s259, 2
        %s261 = scalar_lea.vmem [#allocation4], %s260
        %p262 = pneg %p168
        %p263 = pneg %p165
        %s264 = sand.u32 %s27, 1
        %s265 = scalar_lea.sflag [#allocation5], %s264
        %s266 = sand.u32 %s155, 1
        %s267 = smul.addr %s266, 32
        %s268 = scalar_lea.vmem [#allocation6], %s267
        %p269 = pneg %p194
        %p270 = pneg %p191
        %s271 = sand.u32 %s181, 1
        %s272 = scalar_lea.sflag [#allocation8], %s271
        %s273 = sand.u32 %s181, 1
        %s274 = smul.addr %s273, 2
        %s275 = scalar_lea.vmem [#allocation7], %s274
        %s276 = smul.u32 4, %s27
        %p277 = scmp.lt.s32.totalorder %s276, 7
        %s278 = scalar_select %p277, %s276, 7
        %s279 = smul.addr %s278, 18
        %s280 = smul.addr %s279, 4
        %s281 = scalar_lea.vmem %s0, %s280
        %s282 = smul.u32 4, %s27
        %s283 = smul.u32 8, %s27
        %s284 = smul.u32 8, %s27
        %v286 = vld [vmem:[%s281] sm:$0xf]
        %v287 = vld [vmem:[%s281 + $0x8] sm:$0xf]
        %v288 = vld [vmem:[%s281 + $0x10] sm:$0xf]
        %v289 = vld [vmem:[%s281 + $0x18] sm:$0xf]
        %v290 = vld [vmem:[%s281 + $0x20] sm:$0xf]
        %v291 = vld [vmem:[%s281 + $0x28] sm:$0xf]
        %v292 = vld [vmem:[%s281 + $0x30] sm:$0xf]
        %v293 = vld [vmem:[%s281 + $0x38] sm:$0xf]
        %v294 = vld [vmem:[%s1] sm:$0x3]
        %s295 = scalar_lea.vmem %s281, 72
        %v296 = vld [vmem:[%s295] sm:$0xf]
        %v297 = vld [vmem:[%s295 + $0x8] sm:$0xf]
        %v298 = vld [vmem:[%s295 + $0x10] sm:$0xf]
        %v299 = vld [vmem:[%s295 + $0x18] sm:$0xf]
        %v300 = vld [vmem:[%s295 + $0x20] sm:$0xf]
        %v301 = vld [vmem:[%s295 + $0x28] sm:$0xf]
        %v302 = vld [vmem:[%s295 + $0x30] sm:$0xf]
        %v303 = vld [vmem:[%s295 + $0x38] sm:$0xf]
        %s304 = scalar_lea.vmem %s1, 2
        %v305 = vld [vmem:[%s304] sm:$0x3]
        %v314 = vunpack.c.l.b16 %v296
        %v315 = vunpack.c.l.b16 %v297
        %v316 = vunpack.c.l.b16 %v298
        %v317 = vunpack.c.l.b16 %v299
        %v318 = vunpack.c.l.b16 %v300
        %v319 = vunpack.c.l.b16 %v301
        %v320 = vunpack.c.l.b16 %v302
        %v321 = vunpack.c.l.b16 %v303
        %v322 = vpack.c.b16 %v315, %v314
        %v323 = vpack.c.b16 %v317, %v316
        %v324 = vpack.c.b16 %v319, %v318
        %v325 = vpack.c.b16 %v321, %v320
        %vm326 = vcmask 31744
        %v328 = vsel %vm326, %v322, 0
        %v331 = vsel %vm326, %v323, 0
        %v334 = vsel %vm326, %v324, 0
        %v337 = vsel %vm326, %v325, 0
        %vm339 = vcmask 1041408
        %v341 = vsel %vm339, %v305, 0
        %343 = vmatpush.bf16.msra.mxu0 0
        %344 = vmatpush.bf16.msra.mxu0 0
        %345 = vmatpush.bf16.msra.mxu0 0
        %346 = vmatpush.bf16.msra.mxu0 0
        %347 = vmatpush.bf16.msra.mxu0 0
        %348 = vmatpush.bf16.msra.mxu0 0
        %349 = vmatpush.bf16.msra.mxu0 0
        %350 = vmatpush.bf16.msra.mxu0 %v341
        %351 = vmatmul.bf16.gmra.mxu0 %v328
        %v352 = vpop.f32.mrf.mxu0
        %v353 = vadd.f32 0.0, %v352
        %v354 = vpop.f32.mrf.mxu0
        %v355 = vadd.f32 0.0, %v354
        %356 = vmatmul.bf16.gmra.mxu0 %v331
        %v357 = vpop.f32.mrf.mxu0
        %v358 = vadd.f32 0.0, %v357
        %v359 = vpop.f32.mrf.mxu0
        %v360 = vadd.f32 0.0, %v359
        %361 = vmatmul.bf16.gmra.mxu0 %v334
        %v362 = vpop.f32.mrf.mxu0
        %v363 = vadd.f32 0.0, %v362
        %v364 = vpop.f32.mrf.mxu0
        %v365 = vadd.f32 0.0, %v364
        %366 = vmatmul.bf16.gmra.mxu0 %v337
        %v367 = vpop.f32.mrf.mxu0
        %v368 = vadd.f32 0.0, %v367
        %v369 = vpop.f32.mrf.mxu0
        %v370 = vadd.f32 0.0, %v369
        %371 = vdwg.mxu0
        %v380 = vunpack.c.l.b16 %v286
        %v381 = vunpack.c.l.b16 %v287
        %v382 = vunpack.c.l.b16 %v288
        %v383 = vunpack.c.l.b16 %v289
        %v384 = vunpack.c.l.b16 %v290
        %v385 = vunpack.c.l.b16 %v291
        %v386 = vunpack.c.l.b16 %v292
        %v387 = vunpack.c.l.b16 %v293
        %v388 = vpack.c.b16 %v381, %v380
        %v389 = vpack.c.b16 %v383, %v382
        %v390 = vpack.c.b16 %v385, %v384
        %v391 = vpack.c.b16 %v387, %v386
        %v393 = vsel %vm326, %v388, 0
        %v396 = vsel %vm326, %v389, 0
        %v399 = vsel %vm326, %v390, 0
        %v402 = vsel %vm326, %v391, 0
        %v405 = vsel %vm339, %v294, 0
        %407 = vmatpush.bf16.msra.mxu0 0
        %408 = vmatpush.bf16.msra.mxu0 0
        %409 = vmatpush.bf16.msra.mxu0 0
        %410 = vmatpush.bf16.msra.mxu0 0
        %411 = vmatpush.bf16.msra.mxu0 0
        %412 = vmatpush.bf16.msra.mxu0 0
        %413 = vmatpush.bf16.msra.mxu0 0
        %414 = vmatpush.bf16.msra.mxu0 %v405
        %415 = vmatmul.bf16.gmra.mxu0 %v393
        %v416 = vpop.f32.mrf.mxu0
        %v417 = vadd.f32 %v353, %v416
        %v418 = vpop.f32.mrf.mxu0
        %v419 = vadd.f32 %v355, %v418
        %420 = vmatmul.bf16.gmra.mxu0 %v396
        %v421 = vpop.f32.mrf.mxu0
        %v422 = vadd.f32 %v358, %v421
        %v423 = vpop.f32.mrf.mxu0
        %v424 = vadd.f32 %v360, %v423
        %425 = vmatmul.bf16.gmra.mxu0 %v399
        %v426 = vpop.f32.mrf.mxu0
        %v427 = vadd.f32 %v363, %v426
        %v428 = vpop.f32.mrf.mxu0
        %v429 = vadd.f32 %v365, %v428
        %430 = vmatmul.bf16.gmra.mxu0 %v402
        %v431 = vpop.f32.mrf.mxu0
        %v432 = vadd.f32 %v368, %v431
        %v433 = vpop.f32.mrf.mxu0
        %v434 = vadd.f32 %v370, %v433
        %435 = vdwg.mxu0
        %v436 = vld [vmem:[%s281] sm:$0xf]
        %v437 = vld [vmem:[%s281 + $0x4] sm:$0x1]
        %v438 = vld [vmem:[%s281 + $0x8] sm:$0xf]
        %v439 = vld [vmem:[%s281 + $0xc] sm:$0x1]
        %v440 = vld [vmem:[%s281 + $0x10] sm:$0xf]
        %v441 = vld [vmem:[%s281 + $0x14] sm:$0x1]
        %v442 = vld [vmem:[%s281 + $0x18] sm:$0xf]
        %v443 = vld [vmem:[%s281 + $0x1c] sm:$0x1]
        %v444 = vld [vmem:[%s281 + $0x20] sm:$0xf]
        %v445 = vld [vmem:[%s281 + $0x24] sm:$0x1]
        %v446 = vld [vmem:[%s281 + $0x28] sm:$0xf]
        %v447 = vld [vmem:[%s281 + $0x2c] sm:$0x1]
        %v448 = vld [vmem:[%s281 + $0x30] sm:$0xf]
        %v449 = vld [vmem:[%s281 + $0x34] sm:$0x1]
        %v450 = vld [vmem:[%s281 + $0x38] sm:$0xf]
        %v451 = vld [vmem:[%s281 + $0x3c] sm:$0x1]
        %vm452 = vsmask.f32 3328
        %vm453 = vsmask.f32 7440
        %vm454 = vmor %vm452, %vm453
        %v456 = vshrl.u32 %v436, 16
        %v458 = vrot.slane %v456, 4
        %v459 = vshll.u32 %v436, 16
        %v461 = vrot.slane %v459, 5
        %v462 = vor.u32 %v458, %v461
        %v463 = vrot.slane %v462, 4
        %v465 = vshll.u32 %v437, 16
        %v467 = vrot.slane %v465, 5
        %v468 = vsel %vm454, %v463, %v467
        %v470 = vshrl.u32 %v438, 16
        %v472 = vrot.slane %v470, 4
        %v473 = vshll.u32 %v438, 16
        %v475 = vrot.slane %v473, 5
        %v476 = vor.u32 %v472, %v475
        %v477 = vrot.slane %v476, 4
        %v479 = vshll.u32 %v439, 16
        %v481 = vrot.slane %v479, 5
        %v482 = vsel %vm454, %v477, %v481
        %v484 = vshrl.u32 %v440, 16
        %v486 = vrot.slane %v484, 4
        %v487 = vshll.u32 %v440, 16
        %v489 = vrot.slane %v487, 5
        %v490 = vor.u32 %v486, %v489
        %v491 = vrot.slane %v490, 4
        %v493 = vshll.u32 %v441, 16
        %v495 = vrot.slane %v493, 5
        %v496 = vsel %vm454, %v491, %v495
        %v498 = vshrl.u32 %v442, 16
        %v500 = vrot.slane %v498, 4
        %v501 = vshll.u32 %v442, 16
        %v503 = vrot.slane %v501, 5
        %v504 = vor.u32 %v500, %v503
        %v505 = vrot.slane %v504, 4
        %v507 = vshll.u32 %v443, 16
        %v509 = vrot.slane %v507, 5
        %v510 = vsel %vm454, %v505, %v509
        %v512 = vshrl.u32 %v444, 16
        %v514 = vrot.slane %v512, 4
        %v515 = vshll.u32 %v444, 16
        %v517 = vrot.slane %v515, 5
        %v518 = vor.u32 %v514, %v517
        %v519 = vrot.slane %v518, 4
        %v521 = vshll.u32 %v445, 16
        %v523 = vrot.slane %v521, 5
        %v524 = vsel %vm454, %v519, %v523
        %v526 = vshrl.u32 %v446, 16
        %v528 = vrot.slane %v526, 4
        %v529 = vshll.u32 %v446, 16
        %v531 = vrot.slane %v529, 5
        %v532 = vor.u32 %v528, %v531
        %v533 = vrot.slane %v532, 4
        %v535 = vshll.u32 %v447, 16
        %v537 = vrot.slane %v535, 5
        %v538 = vsel %vm454, %v533, %v537
        %v540 = vshrl.u32 %v448, 16
        %v542 = vrot.slane %v540, 4
        %v543 = vshll.u32 %v448, 16
        %v545 = vrot.slane %v543, 5
        %v546 = vor.u32 %v542, %v545
        %v547 = vrot.slane %v546, 4
        %v549 = vshll.u32 %v449, 16
        %v551 = vrot.slane %v549, 5
        %v552 = vsel %vm454, %v547, %v551
        %v554 = vshrl.u32 %v450, 16
        %v556 = vrot.slane %v554, 4
        %v557 = vshll.u32 %v450, 16
        %v559 = vrot.slane %v557, 5
        %v560 = vor.u32 %v556, %v559
        %v561 = vrot.slane %v560, 4
        %v563 = vshll.u32 %v451, 16
        %v565 = vrot.slane %v563, 5
        %v566 = vsel %vm454, %v561, %v565
        %s567 = scalar_lea.vmem %s1, 4
        %v568 = vld [vmem:[%s567] sm:$0x3]
        %v569 = vunpack.c.l.b16 %v468
        %v570 = vunpack.c.l.b16 %v482
        %v571 = vunpack.c.l.b16 %v496
        %v572 = vunpack.c.l.b16 %v510
        %v573 = vunpack.c.l.b16 %v524
        %v574 = vunpack.c.l.b16 %v538
        %v575 = vunpack.c.l.b16 %v552
        %v576 = vunpack.c.l.b16 %v566
        %v577 = vpack.c.b16 %v570, %v569
        %v578 = vpack.c.b16 %v572, %v571
        %v579 = vpack.c.b16 %v574, %v573
        %v580 = vpack.c.b16 %v576, %v575
        %v582 = vsel %vm326, %v577, 0
        %v585 = vsel %vm326, %v578, 0
        %v588 = vsel %vm326, %v579, 0
        %v591 = vsel %vm326, %v580, 0
        %v594 = vsel %vm339, %v568, 0
        %596 = vmatpush.bf16.msra.mxu0 0
        %597 = vmatpush.bf16.msra.mxu0 0
        %598 = vmatpush.bf16.msra.mxu0 0
        %599 = vmatpush.bf16.msra.mxu0 0
        %600 = vmatpush.bf16.msra.mxu0 0
        %601 = vmatpush.bf16.msra.mxu0 0
        %602 = vmatpush.bf16.msra.mxu0 0
        %603 = vmatpush.bf16.msra.mxu0 %v594
        %604 = vmatmul.bf16.gmra.mxu0 %v582
        %v605 = vpop.f32.mrf.mxu0
        %v606 = vadd.f32 0.0, %v605
        %v607 = vpop.f32.mrf.mxu0
        %v608 = vadd.f32 0.0, %v607
        %609 = vmatmul.bf16.gmra.mxu0 %v585
        %v610 = vpop.f32.mrf.mxu0
        %v611 = vadd.f32 0.0, %v610
        %v612 = vpop.f32.mrf.mxu0
        %v613 = vadd.f32 0.0, %v612
        %614 = vmatmul.bf16.gmra.mxu0 %v588
        %v615 = vpop.f32.mrf.mxu0
        %v616 = vadd.f32 0.0, %v615
        %v617 = vpop.f32.mrf.mxu0
        %v618 = vadd.f32 0.0, %v617
        %619 = vmatmul.bf16.gmra.mxu0 %v591
        %v620 = vpop.f32.mrf.mxu0
        %v621 = vadd.f32 0.0, %v620
        %v622 = vpop.f32.mrf.mxu0
        %v623 = vadd.f32 0.0, %v622
        %624 = vdwg.mxu0
        %v625 = vadd.f32 %v417, %v606
        %v626 = vadd.f32 %v419, %v608
        %v627 = vadd.f32 %v422, %v611
        %v628 = vadd.f32 %v424, %v613
        %v629 = vadd.f32 %v427, %v616
        %v630 = vadd.f32 %v429, %v618
        %v631 = vadd.f32 %v432, %v621
        %v632 = vadd.f32 %v434, %v623
        %s633 = scalar_lea.vmem %s281, 144
        %v634 = vld [vmem:[%s633] sm:$0xf]
        %v635 = vld [vmem:[%s633 + $0x8] sm:$0xf]
        %v636 = vld [vmem:[%s633 + $0x10] sm:$0xf]
        %v637 = vld [vmem:[%s633 + $0x18] sm:$0xf]
        %v638 = vld [vmem:[%s633 + $0x20] sm:$0xf]
        %v639 = vld [vmem:[%s633 + $0x28] sm:$0xf]
        %v640 = vld [vmem:[%s633 + $0x30] sm:$0xf]
        %v641 = vld [vmem:[%s633 + $0x38] sm:$0xf]
        %s642 = scalar_lea.vmem %s1, 6
        %v643 = vld [vmem:[%s642] sm:$0x3]
        %v652 = vunpack.c.l.b16 %v634
        %v653 = vunpack.c.l.b16 %v635
        %v654 = vunpack.c.l.b16 %v636
        %v655 = vunpack.c.l.b16 %v637
        %v656 = vunpack.c.l.b16 %v638
        %v657 = vunpack.c.l.b16 %v639
        %v658 = vunpack.c.l.b16 %v640
        %v659 = vunpack.c.l.b16 %v641
        %v660 = vpack.c.b16 %v653, %v652
        %v661 = vpack.c.b16 %v655, %v654
        %v662 = vpack.c.b16 %v657, %v656
        %v663 = vpack.c.b16 %v659, %v658
        %v665 = vsel %vm326, %v660, 0
        %v668 = vsel %vm326, %v661, 0
        %v671 = vsel %vm326, %v662, 0
        %v674 = vsel %vm326, %v663, 0
        %v677 = vsel %vm339, %v643, 0
        %679 = vmatpush.bf16.msra.mxu0 0
        %680 = vmatpush.bf16.msra.mxu0 0
        %681 = vmatpush.bf16.msra.mxu0 0
        %682 = vmatpush.bf16.msra.mxu0 0
        %683 = vmatpush.bf16.msra.mxu0 0
        %684 = vmatpush.bf16.msra.mxu0 0
        %685 = vmatpush.bf16.msra.mxu0 0
        %686 = vmatpush.bf16.msra.mxu0 %v677
        %687 = vmatmul.bf16.gmra.mxu0 %v665
        %v688 = vpop.f32.mrf.mxu0
        %v689 = vadd.f32 0.0, %v688
        %v690 = vpop.f32.mrf.mxu0
        %v691 = vadd.f32 0.0, %v690
        %692 = vmatmul.bf16.gmra.mxu0 %v668
        %v693 = vpop.f32.mrf.mxu0
        %v694 = vadd.f32 0.0, %v693
        %v695 = vpop.f32.mrf.mxu0
        %v696 = vadd.f32 0.0, %v695
        %697 = vmatmul.bf16.gmra.mxu0 %v671
        %v698 = vpop.f32.mrf.mxu0
        %v699 = vadd.f32 0.0, %v698
        %v700 = vpop.f32.mrf.mxu0
        %v701 = vadd.f32 0.0, %v700
        %702 = vmatmul.bf16.gmra.mxu0 %v674
        %v703 = vpop.f32.mrf.mxu0
        %v704 = vadd.f32 0.0, %v703
        %v705 = vpop.f32.mrf.mxu0
        %v706 = vadd.f32 0.0, %v705
        %707 = vdwg.mxu0
        %v708 = vadd.f32 %v625, %v689
        %v709 = vadd.f32 %v626, %v691
        %v710 = vadd.f32 %v627, %v694
        %v711 = vadd.f32 %v628, %v696
        %v712 = vadd.f32 %v629, %v699
        %v713 = vadd.f32 %v630, %v701
        %v714 = vadd.f32 %v631, %v704
        %v715 = vadd.f32 %v632, %v706
        %s716 = scalar_lea.vmem %s281, 216
        %v717 = vld [vmem:[%s716] sm:$0xf]
        %v718 = vld [vmem:[%s716 + $0x8] sm:$0xf]
        %v719 = vld [vmem:[%s716 + $0x10] sm:$0xf]
        %v720 = vld [vmem:[%s716 + $0x18] sm:$0xf]
        %v721 = vld [vmem:[%s716 + $0x20] sm:$0xf]
        %v722 = vld [vmem:[%s716 + $0x28] sm:$0xf]
        %v723 = vld [vmem:[%s716 + $0x30] sm:$0xf]
        %v724 = vld [vmem:[%s716 + $0x38] sm:$0xf]
        %s725 = scalar_lea.vmem %s1, 8
        %v726 = vld [vmem:[%s725] sm:$0x3]
        %v735 = vunpack.c.l.b16 %v717
        %v736 = vunpack.c.l.b16 %v718
        %v737 = vunpack.c.l.b16 %v719
        %v738 = vunpack.c.l.b16 %v720
        %v739 = vunpack.c.l.b16 %v721
        %v740 = vunpack.c.l.b16 %v722
        %v741 = vunpack.c.l.b16 %v723
        %v742 = vunpack.c.l.b16 %v724
        %v743 = vpack.c.b16 %v736, %v735
        %v744 = vpack.c.b16 %v738, %v737
        %v745 = vpack.c.b16 %v740, %v739
        %v746 = vpack.c.b16 %v742, %v741
        %v748 = vsel %vm326, %v743, 0
        %v751 = vsel %vm326, %v744, 0
        %v754 = vsel %vm326, %v745, 0
        %v757 = vsel %vm326, %v746, 0
        %v760 = vsel %vm339, %v726, 0
        %762 = vmatpush.bf16.msra.mxu0 0
        %763 = vmatpush.bf16.msra.mxu0 0
        %764 = vmatpush.bf16.msra.mxu0 0
        %765 = vmatpush.bf16.msra.mxu0 0
        %766 = vmatpush.bf16.msra.mxu0 0
        %767 = vmatpush.bf16.msra.mxu0 0
        %768 = vmatpush.bf16.msra.mxu0 0
        %769 = vmatpush.bf16.msra.mxu0 %v760
        %770 = vmatmul.bf16.gmra.mxu0 %v748
        %v771 = vpop.f32.mrf.mxu0
        %v772 = vadd.f32 0.0, %v771
        %v773 = vpop.f32.mrf.mxu0
        %v774 = vadd.f32 0.0, %v773
        %775 = vmatmul.bf16.gmra.mxu0 %v751
        %v776 = vpop.f32.mrf.mxu0
        %v777 = vadd.f32 0.0, %v776
        %v778 = vpop.f32.mrf.mxu0
        %v779 = vadd.f32 0.0, %v778
        %780 = vmatmul.bf16.gmra.mxu0 %v754
        %v781 = vpop.f32.mrf.mxu0
        %v782 = vadd.f32 0.0, %v781
        %v783 = vpop.f32.mrf.mxu0
        %v784 = vadd.f32 0.0, %v783
        %785 = vmatmul.bf16.gmra.mxu0 %v757
        %v786 = vpop.f32.mrf.mxu0
        %v787 = vadd.f32 0.0, %v786
        %v788 = vpop.f32.mrf.mxu0
        %v789 = vadd.f32 0.0, %v788
        %790 = vdwg.mxu0
        %v791 = vadd.f32 %v708, %v772
        %v792 = vadd.f32 %v709, %v774
        %v793 = vadd.f32 %v710, %v777
        %v794 = vadd.f32 %v711, %v779
        %v795 = vadd.f32 %v712, %v782
        %v796 = vadd.f32 %v713, %v784
        %v797 = vadd.f32 %v714, %v787
        %v798 = vadd.f32 %v715, %v789
        %v799 = vld [vmem:[%s633] sm:$0xf]
        %v800 = vld [vmem:[%s633 + $0x4] sm:$0x1]
        %v801 = vld [vmem:[%s633 + $0x8] sm:$0xf]
        %v802 = vld [vmem:[%s633 + $0xc] sm:$0x1]
        %v803 = vld [vmem:[%s633 + $0x10] sm:$0xf]
        %v804 = vld [vmem:[%s633 + $0x14] sm:$0x1]
        %v805 = vld [vmem:[%s633 + $0x18] sm:$0xf]
        %v806 = vld [vmem:[%s633 + $0x1c] sm:$0x1]
        %v807 = vld [vmem:[%s633 + $0x20] sm:$0xf]
        %v808 = vld [vmem:[%s633 + $0x24] sm:$0x1]
        %v809 = vld [vmem:[%s633 + $0x28] sm:$0xf]
        %v810 = vld [vmem:[%s633 + $0x2c] sm:$0x1]
        %v811 = vld [vmem:[%s633 + $0x30] sm:$0xf]
        %v812 = vld [vmem:[%s633 + $0x34] sm:$0x1]
        %v813 = vld [vmem:[%s633 + $0x38] sm:$0xf]
        %v814 = vld [vmem:[%s633 + $0x3c] sm:$0x1]
        %v816 = vshrl.u32 %v799, 16
        %v818 = vrot.slane %v816, 4
        %v819 = vshll.u32 %v799, 16
        %v821 = vrot.slane %v819, 5
        %v822 = vor.u32 %v818, %v821
        %v823 = vrot.slane %v822, 4
        %v825 = vshll.u32 %v800, 16
        %v827 = vrot.slane %v825, 5
        %v828 = vsel %vm454, %v823, %v827
        %v830 = vshrl.u32 %v801, 16
        %v832 = vrot.slane %v830, 4
        %v833 = vshll.u32 %v801, 16
        %v835 = vrot.slane %v833, 5
        %v836 = vor.u32 %v832, %v835
        %v837 = vrot.slane %v836, 4
        %v839 = vshll.u32 %v802, 16
        %v841 = vrot.slane %v839, 5
        %v842 = vsel %vm454, %v837, %v841
        %v844 = vshrl.u32 %v803, 16
        %v846 = vrot.slane %v844, 4
        %v847 = vshll.u32 %v803, 16
        %v849 = vrot.slane %v847, 5
        %v850 = vor.u32 %v846, %v849
        %v851 = vrot.slane %v850, 4
        %v853 = vshll.u32 %v804, 16
        %v855 = vrot.slane %v853, 5
        %v856 = vsel %vm454, %v851, %v855
        %v858 = vshrl.u32 %v805, 16
        %v860 = vrot.slane %v858, 4
        %v861 = vshll.u32 %v805, 16
        %v863 = vrot.slane %v861, 5
        %v864 = vor.u32 %v860, %v863
        %v865 = vrot.slane %v864, 4
        %v867 = vshll.u32 %v806, 16
        %v869 = vrot.slane %v867, 5
        %v870 = vsel %vm454, %v865, %v869
        %v872 = vshrl.u32 %v807, 16
        %v874 = vrot.slane %v872, 4
        %v875 = vshll.u32 %v807, 16
        %v877 = vrot.slane %v875, 5
        %v878 = vor.u32 %v874, %v877
        %v879 = vrot.slane %v878, 4
        %v881 = vshll.u32 %v808, 16
        %v883 = vrot.slane %v881, 5
        %v884 = vsel %vm454, %v879, %v883
        %v886 = vshrl.u32 %v809, 16
        %v888 = vrot.slane %v886, 4
        %v889 = vshll.u32 %v809, 16
        %v891 = vrot.slane %v889, 5
        %v892 = vor.u32 %v888, %v891
        %v893 = vrot.slane %v892, 4
        %v895 = vshll.u32 %v810, 16
        %v897 = vrot.slane %v895, 5
        %v898 = vsel %vm454, %v893, %v897
        %v900 = vshrl.u32 %v811, 16
        %v902 = vrot.slane %v900, 4
        %v903 = vshll.u32 %v811, 16
        %v905 = vrot.slane %v903, 5
        %v906 = vor.u32 %v902, %v905
        %v907 = vrot.slane %v906, 4
        %v909 = vshll.u32 %v812, 16
        %v911 = vrot.slane %v909, 5
        %v912 = vsel %vm454, %v907, %v911
        %v914 = vshrl.u32 %v813, 16
        %v916 = vrot.slane %v914, 4
        %v917 = vshll.u32 %v813, 16
        %v919 = vrot.slane %v917, 5
        %v920 = vor.u32 %v916, %v919
        %v921 = vrot.slane %v920, 4
        %v923 = vshll.u32 %v814, 16
        %v925 = vrot.slane %v923, 5
        %v926 = vsel %vm454, %v921, %v925
        %s927 = scalar_lea.vmem %s1, 10
        %v928 = vld [vmem:[%s927] sm:$0x3]
        %v929 = vunpack.c.l.b16 %v828
        %v930 = vunpack.c.l.b16 %v842
        %v931 = vunpack.c.l.b16 %v856
        %v932 = vunpack.c.l.b16 %v870
        %v933 = vunpack.c.l.b16 %v884
        %v934 = vunpack.c.l.b16 %v898
        %v935 = vunpack.c.l.b16 %v912
        %v936 = vunpack.c.l.b16 %v926
        %v937 = vpack.c.b16 %v930, %v929
        %v938 = vpack.c.b16 %v932, %v931
        %v939 = vpack.c.b16 %v934, %v933
        %v940 = vpack.c.b16 %v936, %v935
        %v942 = vsel %vm326, %v937, 0
        %v945 = vsel %vm326, %v938, 0
        %v948 = vsel %vm326, %v939, 0
        %v951 = vsel %vm326, %v940, 0
        %v954 = vsel %vm339, %v928, 0
        %956 = vmatpush.bf16.msra.mxu0 0
        %957 = vmatpush.bf16.msra.mxu0 0
        %958 = vmatpush.bf16.msra.mxu0 0
        %959 = vmatpush.bf16.msra.mxu0 0
        %960 = vmatpush.bf16.msra.mxu0 0
        %961 = vmatpush.bf16.msra.mxu0 0
        %962 = vmatpush.bf16.msra.mxu0 0
        %963 = vmatpush.bf16.msra.mxu0 %v954
        %964 = vmatmul.bf16.gmra.mxu0 %v942
        %v965 = vpop.f32.mrf.mxu0
        %v966 = vadd.f32 0.0, %v965
        %v967 = vpop.f32.mrf.mxu0
        %v968 = vadd.f32 0.0, %v967
        %969 = vmatmul.bf16.gmra.mxu0 %v945
        %v970 = vpop.f32.mrf.mxu0
        %v971 = vadd.f32 0.0, %v970
        %v972 = vpop.f32.mrf.mxu0
        %v973 = vadd.f32 0.0, %v972
        %974 = vmatmul.bf16.gmra.mxu0 %v948
        %v975 = vpop.f32.mrf.mxu0
        %v976 = vadd.f32 0.0, %v975
        %v977 = vpop.f32.mrf.mxu0
        %v978 = vadd.f32 0.0, %v977
        %979 = vmatmul.bf16.gmra.mxu0 %v951
        %v980 = vpop.f32.mrf.mxu0
        %v981 = vadd.f32 0.0, %v980
        %v982 = vpop.f32.mrf.mxu0
        %v983 = vadd.f32 0.0, %v982
        %984 = vdwg.mxu0
        %v985 = vadd.f32 %v791, %v966
        %v986 = vadd.f32 %v792, %v968
        %v987 = vadd.f32 %v793, %v971
        %v988 = vadd.f32 %v794, %v973
        %v989 = vadd.f32 %v795, %v976
        %v990 = vadd.f32 %v796, %v978
        %v991 = vadd.f32 %v797, %v981
        %v992 = vadd.f32 %v798, %v983
        %s993 = scalar_lea.vmem %s281, 8
        %v994 = vld [vmem:[%s993] sm:$0xf]
        %v995 = vld [vmem:[%s993 + $0x8] sm:$0xf]
        %v996 = vld [vmem:[%s993 + $0x10] sm:$0xf]
        %v997 = vld [vmem:[%s993 + $0x18] sm:$0xf]
        %v998 = vld [vmem:[%s993 + $0x20] sm:$0xf]
        %v999 = vld [vmem:[%s993 + $0x28] sm:$0xf]
        %v1000 = vld [vmem:[%s993 + $0x30] sm:$0xf]
        %v1001 = vld [vmem:[%s993 + $0x38] sm:$0xf]
        %s1002 = scalar_lea.vmem %s1, 12
        %v1003 = vld [vmem:[%s1002] sm:$0x3]
        %v1012 = vunpack.c.l.b16 %v994
        %v1013 = vunpack.c.l.b16 %v995
        %v1014 = vunpack.c.l.b16 %v996
        %v1015 = vunpack.c.l.b16 %v997
        %v1016 = vunpack.c.l.b16 %v998
        %v1017 = vunpack.c.l.b16 %v999
        %v1018 = vunpack.c.l.b16 %v1000
        %v1019 = vunpack.c.l.b16 %v1001
        %v1020 = vpack.c.b16 %v1013, %v1012
        %v1021 = vpack.c.b16 %v1015, %v1014
        %v1022 = vpack.c.b16 %v1017, %v1016
        %v1023 = vpack.c.b16 %v1019, %v1018
        %v1025 = vsel %vm326, %v1020, 0
        %v1028 = vsel %vm326, %v1021, 0
        %v1031 = vsel %vm326, %v1022, 0
        %v1034 = vsel %vm326, %v1023, 0
        %v1037 = vsel %vm339, %v1003, 0
        %1039 = vmatpush.bf16.msra.mxu0 0
        %1040 = vmatpush.bf16.msra.mxu0 0
        %1041 = vmatpush.bf16.msra.mxu0 0
        %1042 = vmatpush.bf16.msra.mxu0 0
        %1043 = vmatpush.bf16.msra.mxu0 0
        %1044 = vmatpush.bf16.msra.mxu0 0
        %1045 = vmatpush.bf16.msra.mxu0 0
        %1046 = vmatpush.bf16.msra.mxu0 %v1037
        %1047 = vmatmul.bf16.gmra.mxu0 %v1025
        %v1048 = vpop.f32.mrf.mxu0
        %v1049 = vadd.f32 0.0, %v1048
        %v1050 = vpop.f32.mrf.mxu0
        %v1051 = vadd.f32 0.0, %v1050
        %1052 = vmatmul.bf16.gmra.mxu0 %v1028
        %v1053 = vpop.f32.mrf.mxu0
        %v1054 = vadd.f32 0.0, %v1053
        %v1055 = vpop.f32.mrf.mxu0
        %v1056 = vadd.f32 0.0, %v1055
        %1057 = vmatmul.bf16.gmra.mxu0 %v1031
        %v1058 = vpop.f32.mrf.mxu0
        %v1059 = vadd.f32 0.0, %v1058
        %v1060 = vpop.f32.mrf.mxu0
        %v1061 = vadd.f32 0.0, %v1060
        %1062 = vmatmul.bf16.gmra.mxu0 %v1034
        %v1063 = vpop.f32.mrf.mxu0
        %v1064 = vadd.f32 0.0, %v1063
        %v1065 = vpop.f32.mrf.mxu0
        %v1066 = vadd.f32 0.0, %v1065
        %1067 = vdwg.mxu0
        %v1068 = vadd.f32 %v985, %v1049
        %v1069 = vadd.f32 %v986, %v1051
        %v1070 = vadd.f32 %v987, %v1054
        %v1071 = vadd.f32 %v988, %v1056
        %v1072 = vadd.f32 %v989, %v1059
        %v1073 = vadd.f32 %v990, %v1061
        %v1074 = vadd.f32 %v991, %v1064
        %v1075 = vadd.f32 %v992, %v1066
        %s1076 = scalar_lea.vmem %s281, 80
        %v1077 = vld [vmem:[%s1076] sm:$0xf]
        %v1078 = vld [vmem:[%s1076 + $0x8] sm:$0xf]
        %v1079 = vld [vmem:[%s1076 + $0x10] sm:$0xf]
        %v1080 = vld [vmem:[%s1076 + $0x18] sm:$0xf]
        %v1081 = vld [vmem:[%s1076 + $0x20] sm:$0xf]
        %v1082 = vld [vmem:[%s1076 + $0x28] sm:$0xf]
        %v1083 = vld [vmem:[%s1076 + $0x30] sm:$0xf]
        %v1084 = vld [vmem:[%s1076 + $0x38] sm:$0xf]
        %s1085 = scalar_lea.vmem %s1, 14
        %v1086 = vld [vmem:[%s1085] sm:$0x3]
        %v1095 = vunpack.c.l.b16 %v1077
        %v1096 = vunpack.c.l.b16 %v1078
        %v1097 = vunpack.c.l.b16 %v1079
        %v1098 = vunpack.c.l.b16 %v1080
        %v1099 = vunpack.c.l.b16 %v1081
        %v1100 = vunpack.c.l.b16 %v1082
        %v1101 = vunpack.c.l.b16 %v1083
        %v1102 = vunpack.c.l.b16 %v1084
        %v1103 = vpack.c.b16 %v1096, %v1095
        %v1104 = vpack.c.b16 %v1098, %v1097
        %v1105 = vpack.c.b16 %v1100, %v1099
        %v1106 = vpack.c.b16 %v1102, %v1101
        %v1108 = vsel %vm326, %v1103, 0
        %v1111 = vsel %vm326, %v1104, 0
        %v1114 = vsel %vm326, %v1105, 0
        %v1117 = vsel %vm326, %v1106, 0
        %v1120 = vsel %vm339, %v1086, 0
        %1122 = vmatpush.bf16.msra.mxu0 0
        %1123 = vmatpush.bf16.msra.mxu0 0
        %1124 = vmatpush.bf16.msra.mxu0 0
        %1125 = vmatpush.bf16.msra.mxu0 0
        %1126 = vmatpush.bf16.msra.mxu0 0
        %1127 = vmatpush.bf16.msra.mxu0 0
        %1128 = vmatpush.bf16.msra.mxu0 0
        %1129 = vmatpush.bf16.msra.mxu0 %v1120
        %1130 = vmatmul.bf16.gmra.mxu0 %v1108
        %v1131 = vpop.f32.mrf.mxu0
        %v1132 = vadd.f32 0.0, %v1131
        %v1133 = vpop.f32.mrf.mxu0
        %v1134 = vadd.f32 0.0, %v1133
        %1135 = vmatmul.bf16.gmra.mxu0 %v1111
        %v1136 = vpop.f32.mrf.mxu0
        %v1137 = vadd.f32 0.0, %v1136
        %v1138 = vpop.f32.mrf.mxu0
        %v1139 = vadd.f32 0.0, %v1138
        %1140 = vmatmul.bf16.gmra.mxu0 %v1114
        %v1141 = vpop.f32.mrf.mxu0
        %v1142 = vadd.f32 0.0, %v1141
        %v1143 = vpop.f32.mrf.mxu0
        %v1144 = vadd.f32 0.0, %v1143
        %1145 = vmatmul.bf16.gmra.mxu0 %v1117
        %v1146 = vpop.f32.mrf.mxu0
        %v1147 = vadd.f32 0.0, %v1146
        %v1148 = vpop.f32.mrf.mxu0
        %v1149 = vadd.f32 0.0, %v1148
        %1150 = vdwg.mxu0
        %v1151 = vadd.f32 %v1068, %v1132
        %v1152 = vadd.f32 %v1069, %v1134
        %v1153 = vadd.f32 %v1070, %v1137
        %v1154 = vadd.f32 %v1071, %v1139
        %v1155 = vadd.f32 %v1072, %v1142
        %v1156 = vadd.f32 %v1073, %v1144
        %v1157 = vadd.f32 %v1074, %v1147
        %v1158 = vadd.f32 %v1075, %v1149
        %v1159 = vld [vmem:[%s993] sm:$0xf]
        %v1160 = vld [vmem:[%s993 + $0x4] sm:$0x1]
        %v1161 = vld [vmem:[%s993 + $0x8] sm:$0xf]
        %v1162 = vld [vmem:[%s993 + $0xc] sm:$0x1]
        %v1163 = vld [vmem:[%s993 + $0x10] sm:$0xf]
        %v1164 = vld [vmem:[%s993 + $0x14] sm:$0x1]
        %v1165 = vld [vmem:[%s993 + $0x18] sm:$0xf]
        %v1166 = vld [vmem:[%s993 + $0x1c] sm:$0x1]
        %v1167 = vld [vmem:[%s993 + $0x20] sm:$0xf]
        %v1168 = vld [vmem:[%s993 + $0x24] sm:$0x1]
        %v1169 = vld [vmem:[%s993 + $0x28] sm:$0xf]
        %v1170 = vld [vmem:[%s993 + $0x2c] sm:$0x1]
        %v1171 = vld [vmem:[%s993 + $0x30] sm:$0xf]
        %v1172 = vld [vmem:[%s993 + $0x34] sm:$0x1]
        %v1173 = vld [vmem:[%s993 + $0x38] sm:$0xf]
        %v1174 = vld [vmem:[%s993 + $0x3c] sm:$0x1]
        %v1176 = vshrl.u32 %v1159, 16
        %v1178 = vrot.slane %v1176, 4
        %v1179 = vshll.u32 %v1159, 16
        %v1181 = vrot.slane %v1179, 5
        %v1182 = vor.u32 %v1178, %v1181
        %v1183 = vrot.slane %v1182, 4
        %v1185 = vshll.u32 %v1160, 16
        %v1187 = vrot.slane %v1185, 5
        %v1188 = vsel %vm454, %v1183, %v1187
        %v1190 = vshrl.u32 %v1161, 16
        %v1192 = vrot.slane %v1190, 4
        %v1193 = vshll.u32 %v1161, 16
        %v1195 = vrot.slane %v1193, 5
        %v1196 = vor.u32 %v1192, %v1195
        %v1197 = vrot.slane %v1196, 4
        %v1199 = vshll.u32 %v1162, 16
        %v1201 = vrot.slane %v1199, 5
        %v1202 = vsel %vm454, %v1197, %v1201
        %v1204 = vshrl.u32 %v1163, 16
        %v1206 = vrot.slane %v1204, 4
        %v1207 = vshll.u32 %v1163, 16
        %v1209 = vrot.slane %v1207, 5
        %v1210 = vor.u32 %v1206, %v1209
        %v1211 = vrot.slane %v1210, 4
        %v1213 = vshll.u32 %v1164, 16
        %v1215 = vrot.slane %v1213, 5
        %v1216 = vsel %vm454, %v1211, %v1215
        %v1218 = vshrl.u32 %v1165, 16
        %v1220 = vrot.slane %v1218, 4
        %v1221 = vshll.u32 %v1165, 16
        %v1223 = vrot.slane %v1221, 5
        %v1224 = vor.u32 %v1220, %v1223
        %v1225 = vrot.slane %v1224, 4
        %v1227 = vshll.u32 %v1166, 16
        %v1229 = vrot.slane %v1227, 5
        %v1230 = vsel %vm454, %v1225, %v1229
        %v1232 = vshrl.u32 %v1167, 16
        %v1234 = vrot.slane %v1232, 4
        %v1235 = vshll.u32 %v1167, 16
        %v1237 = vrot.slane %v1235, 5
        %v1238 = vor.u32 %v1234, %v1237
        %v1239 = vrot.slane %v1238, 4
        %v1241 = vshll.u32 %v1168, 16
        %v1243 = vrot.slane %v1241, 5
        %v1244 = vsel %vm454, %v1239, %v1243
        %v1246 = vshrl.u32 %v1169, 16
        %v1248 = vrot.slane %v1246, 4
        %v1249 = vshll.u32 %v1169, 16
        %v1251 = vrot.slane %v1249, 5
        %v1252 = vor.u32 %v1248, %v1251
        %v1253 = vrot.slane %v1252, 4
        %v1255 = vshll.u32 %v1170, 16
        %v1257 = vrot.slane %v1255, 5
        %v1258 = vsel %vm454, %v1253, %v1257
        %v1260 = vshrl.u32 %v1171, 16
        %v1262 = vrot.slane %v1260, 4
        %v1263 = vshll.u32 %v1171, 16
        %v1265 = vrot.slane %v1263, 5
        %v1266 = vor.u32 %v1262, %v1265
        %v1267 = vrot.slane %v1266, 4
        %v1269 = vshll.u32 %v1172, 16
        %v1271 = vrot.slane %v1269, 5
        %v1272 = vsel %vm454, %v1267, %v1271
        %v1274 = vshrl.u32 %v1173, 16
        %v1276 = vrot.slane %v1274, 4
        %v1277 = vshll.u32 %v1173, 16
        %v1279 = vrot.slane %v1277, 5
        %v1280 = vor.u32 %v1276, %v1279
        %v1281 = vrot.slane %v1280, 4
        %v1283 = vshll.u32 %v1174, 16
        %v1285 = vrot.slane %v1283, 5
        %v1286 = vsel %vm454, %v1281, %v1285
        %s1287 = scalar_lea.vmem %s1, 16
        %v1288 = vld [vmem:[%s1287] sm:$0x3]
        %v1289 = vunpack.c.l.b16 %v1188
        %v1290 = vunpack.c.l.b16 %v1202
        %v1291 = vunpack.c.l.b16 %v1216
        %v1292 = vunpack.c.l.b16 %v1230
        %v1293 = vunpack.c.l.b16 %v1244
        %v1294 = vunpack.c.l.b16 %v1258
        %v1295 = vunpack.c.l.b16 %v1272
        %v1296 = vunpack.c.l.b16 %v1286
        %v1297 = vpack.c.b16 %v1290, %v1289
        %v1298 = vpack.c.b16 %v1292, %v1291
        %v1299 = vpack.c.b16 %v1294, %v1293
        %v1300 = vpack.c.b16 %v1296, %v1295
        %v1302 = vsel %vm326, %v1297, 0
        %v1305 = vsel %vm326, %v1298, 0
        %v1308 = vsel %vm326, %v1299, 0
        %v1311 = vsel %vm326, %v1300, 0
        %v1314 = vsel %vm339, %v1288, 0
        %1316 = vmatpush.bf16.msra.mxu0 0
        %1317 = vmatpush.bf16.msra.mxu0 0
        %1318 = vmatpush.bf16.msra.mxu0 0
        %1319 = vmatpush.bf16.msra.mxu0 0
        %1320 = vmatpush.bf16.msra.mxu0 0
        %1321 = vmatpush.bf16.msra.mxu0 0
        %1322 = vmatpush.bf16.msra.mxu0 0
        %1323 = vmatpush.bf16.msra.mxu0 %v1314
        %1324 = vmatmul.bf16.gmra.mxu0 %v1302
        %v1325 = vpop.f32.mrf.mxu0
        %v1326 = vadd.f32 0.0, %v1325
        %v1327 = vpop.f32.mrf.mxu0
        %v1328 = vadd.f32 0.0, %v1327
        %1329 = vmatmul.bf16.gmra.mxu0 %v1305
        %v1330 = vpop.f32.mrf.mxu0
        %v1331 = vadd.f32 0.0, %v1330
        %v1332 = vpop.f32.mrf.mxu0
        %v1333 = vadd.f32 0.0, %v1332
        %1334 = vmatmul.bf16.gmra.mxu0 %v1308
        %v1335 = vpop.f32.mrf.mxu0
        %v1336 = vadd.f32 0.0, %v1335
        %v1337 = vpop.f32.mrf.mxu0
        %v1338 = vadd.f32 0.0, %v1337
        %1339 = vmatmul.bf16.gmra.mxu0 %v1311
        %v1340 = vpop.f32.mrf.mxu0
        %v1341 = vadd.f32 0.0, %v1340
        %v1342 = vpop.f32.mrf.mxu0
        %v1343 = vadd.f32 0.0, %v1342
        %1344 = vdwg.mxu0
        %v1345 = vadd.f32 %v1151, %v1326
        %v1346 = vadd.f32 %v1152, %v1328
        %v1347 = vadd.f32 %v1153, %v1331
        %v1348 = vadd.f32 %v1154, %v1333
        %v1349 = vadd.f32 %v1155, %v1336
        %v1350 = vadd.f32 %v1156, %v1338
        %v1351 = vadd.f32 %v1157, %v1341
        %v1352 = vadd.f32 %v1158, %v1343
        %v1353 = vpack.c.bf16 %v1345, %v1345
        %v1354 = vpack.c.bf16 %v1346, %v1346
        %v1355 = vpack.c.bf16 %v1347, %v1347
        %v1356 = vpack.c.bf16 %v1348, %v1348
        %v1357 = vpack.c.bf16 %v1349, %v1349
        %v1358 = vpack.c.bf16 %v1350, %v1350
        %v1359 = vpack.c.bf16 %v1351, %v1351
        %v1360 = vpack.c.bf16 %v1352, %v1352
        %1361 = vst [vmem:[%s254] sm:$0xf] %v1353
        %1362 = vst [vmem:[%s254 + $0x4] sm:$0xf] %v1354
        %1363 = vst [vmem:[%s254 + $0x8] sm:$0xf] %v1355
        %1364 = vst [vmem:[%s254 + $0xc] sm:$0xf] %v1356
        %1365 = vst [vmem:[%s254 + $0x10] sm:$0xf] %v1357
        %1366 = vst [vmem:[%s254 + $0x14] sm:$0xf] %v1358
        %1367 = vst [vmem:[%s254 + $0x18] sm:$0xf] %v1359
        %1368 = vst [vmem:[%s254 + $0x1c] sm:$0xf] %v1360
        %v1369 = vadd.f32 %v1345, %v1346
        %v1370 = vadd.f32 %v1369, %v1347
        %v1371 = vadd.f32 %v1370, %v1348
        %v1372 = vadd.f32 %v1371, %v1349
        %v1373 = vadd.f32 %v1372, %v1350
        %v1374 = vadd.f32 %v1373, %v1351
        %v1375 = vadd.f32 %v1374, %v1352
        %v1376 = vrot.slane %v1375, 4
        %v1377 = vadd.f32 %v1375, %v1376
        %v1378 = vrot.slane %v1377, 2
        %v1379 = vadd.f32 %v1377, %v1378
        %v1380 = vrot.slane %v1379, 1
        %v1381 = vadd.f32 %v1379, %v1380
        %v1382 = vmul.f32 %v1345, %v1345
        %v1383 = vmul.f32 %v1346, %v1346
        %v1384 = vmul.f32 %v1347, %v1347
        %v1385 = vmul.f32 %v1348, %v1348
        %v1386 = vmul.f32 %v1349, %v1349
        %v1387 = vmul.f32 %v1350, %v1350
        %v1388 = vmul.f32 %v1351, %v1351
        %v1389 = vmul.f32 %v1352, %v1352
        %v1390 = vadd.f32 %v1382, %v1383
        %v1391 = vadd.f32 %v1390, %v1384
        %v1392 = vadd.f32 %v1391, %v1385
        %v1393 = vadd.f32 %v1392, %v1386
        %v1394 = vadd.f32 %v1393, %v1387
        %v1395 = vadd.f32 %v1394, %v1388
        %v1396 = vadd.f32 %v1395, %v1389
        %v1397 = vrot.slane %v1396, 4
        %v1398 = vadd.f32 %v1396, %v1397
        %v1399 = vrot.slane %v1398, 2
        %v1400 = vadd.f32 %v1398, %v1399
        %v1401 = vrot.slane %v1400, 1
        %v1402 = vadd.f32 %v1400, %v1401
        %vm1403 = vcmask 1040384
        %v1404 = vsel %vm1403, %v1381, %v1402
        %1405 = vst [vmem:[%s261] sm:$0x3] %v1404
        %v1406 = vld [vmem:[%s716] sm:$0xf]
        %v1407 = vld [vmem:[%s716 + $0x8] sm:$0xf]
        %v1408 = vld [vmem:[%s716 + $0x10] sm:$0xf]
        %v1409 = vld [vmem:[%s716 + $0x18] sm:$0xf]
        %v1410 = vld [vmem:[%s716 + $0x20] sm:$0xf]
        %v1411 = vld [vmem:[%s716 + $0x28] sm:$0xf]
        %v1412 = vld [vmem:[%s716 + $0x30] sm:$0xf]
        %v1413 = vld [vmem:[%s716 + $0x38] sm:$0xf]
        %v1414 = vld [vmem:[%s2] sm:$0x3]
        %v1423 = vunpack.c.l.b16 %v1406
        %v1424 = vunpack.c.l.b16 %v1407
        %v1425 = vunpack.c.l.b16 %v1408
        %v1426 = vunpack.c.l.b16 %v1409
        %v1427 = vunpack.c.l.b16 %v1410
        %v1428 = vunpack.c.l.b16 %v1411
        %v1429 = vunpack.c.l.b16 %v1412
        %v1430 = vunpack.c.l.b16 %v1413
        %v1431 = vpack.c.b16 %v1424, %v1423
        %v1432 = vpack.c.b16 %v1426, %v1425
        %v1433 = vpack.c.b16 %v1428, %v1427
        %v1434 = vpack.c.b16 %v1430, %v1429
        %v1436 = vsel %vm326, %v1431, 0
        %v1439 = vsel %vm326, %v1432, 0
        %v1442 = vsel %vm326, %v1433, 0
        %v1445 = vsel %vm326, %v1434, 0
        %v1448 = vsel %vm339, %v1414, 0
        %1450 = vmatpush.bf16.msra.mxu0 0
        %1451 = vmatpush.bf16.msra.mxu0 0
        %1452 = vmatpush.bf16.msra.mxu0 0
        %1453 = vmatpush.bf16.msra.mxu0 0
        %1454 = vmatpush.bf16.msra.mxu0 0
        %1455 = vmatpush.bf16.msra.mxu0 0
        %1456 = vmatpush.bf16.msra.mxu0 0
        %1457 = vmatpush.bf16.msra.mxu0 %v1448
        %1458 = vmatmul.bf16.gmra.mxu0 %v1436
        %v1459 = vpop.f32.mrf.mxu0
        %v1460 = vadd.f32 0.0, %v1459
        %v1461 = vpop.f32.mrf.mxu0
        %v1462 = vadd.f32 0.0, %v1461
        %1463 = vmatmul.bf16.gmra.mxu0 %v1439
        %v1464 = vpop.f32.mrf.mxu0
        %v1465 = vadd.f32 0.0, %v1464
        %v1466 = vpop.f32.mrf.mxu0
        %v1467 = vadd.f32 0.0, %v1466
        %1468 = vmatmul.bf16.gmra.mxu0 %v1442
        %v1469 = vpop.f32.mrf.mxu0
        %v1470 = vadd.f32 0.0, %v1469
        %v1471 = vpop.f32.mrf.mxu0
        %v1472 = vadd.f32 0.0, %v1471
        %1473 = vmatmul.bf16.gmra.mxu0 %v1445
        %v1474 = vpop.f32.mrf.mxu0
        %v1475 = vadd.f32 0.0, %v1474
        %v1476 = vpop.f32.mrf.mxu0
        %v1477 = vadd.f32 0.0, %v1476
        %1478 = vdwg.mxu0
        %v1479 = vpack.c.bf16 %v1460, %v1460
        %v1480 = vpack.c.bf16 %v1462, %v1462
        %v1481 = vpack.c.bf16 %v1465, %v1465
        %v1482 = vpack.c.bf16 %v1467, %v1467
        %v1483 = vpack.c.bf16 %v1470, %v1470
        %v1484 = vpack.c.bf16 %v1472, %v1472
        %v1485 = vpack.c.bf16 %v1475, %v1475
        %v1486 = vpack.c.bf16 %v1477, %v1477
        %1487 = vst [vmem:[%s268] sm:$0xf] %v1479
        %1488 = vst [vmem:[%s268 + $0x4] sm:$0xf] %v1480
        %1489 = vst [vmem:[%s268 + $0x8] sm:$0xf] %v1481
        %1490 = vst [vmem:[%s268 + $0xc] sm:$0xf] %v1482
        %1491 = vst [vmem:[%s268 + $0x10] sm:$0xf] %v1483
        %1492 = vst [vmem:[%s268 + $0x14] sm:$0xf] %v1484
        %1493 = vst [vmem:[%s268 + $0x18] sm:$0xf] %v1485
        %1494 = vst [vmem:[%s268 + $0x1c] sm:$0xf] %v1486
        %v1495 = vadd.f32 %v1460, %v1462
        %v1496 = vadd.f32 %v1495, %v1465
        %v1497 = vadd.f32 %v1496, %v1467
        %v1498 = vadd.f32 %v1497, %v1470
        %v1499 = vadd.f32 %v1498, %v1472
        %v1500 = vadd.f32 %v1499, %v1475
        %v1501 = vadd.f32 %v1500, %v1477
        %v1502 = vrot.slane %v1501, 4
        %v1503 = vadd.f32 %v1501, %v1502
        %v1504 = vrot.slane %v1503, 2
        %v1505 = vadd.f32 %v1503, %v1504
        %v1506 = vrot.slane %v1505, 1
        %v1507 = vadd.f32 %v1505, %v1506
        %v1508 = vmul.f32 %v1460, %v1460
        %v1509 = vmul.f32 %v1462, %v1462
        %v1510 = vmul.f32 %v1465, %v1465
        %v1511 = vmul.f32 %v1467, %v1467
        %v1512 = vmul.f32 %v1470, %v1470
        %v1513 = vmul.f32 %v1472, %v1472
        %v1514 = vmul.f32 %v1475, %v1475
        %v1515 = vmul.f32 %v1477, %v1477
        %v1516 = vadd.f32 %v1508, %v1509
        %v1517 = vadd.f32 %v1516, %v1510
        %v1518 = vadd.f32 %v1517, %v1511
        %v1519 = vadd.f32 %v1518, %v1512
        %v1520 = vadd.f32 %v1519, %v1513
        %v1521 = vadd.f32 %v1520, %v1514
        %v1522 = vadd.f32 %v1521, %v1515
        %v1523 = vrot.slane %v1522, 4
        %v1524 = vadd.f32 %v1522, %v1523
        %v1525 = vrot.slane %v1524, 2
        %v1526 = vadd.f32 %v1524, %v1525
        %v1527 = vrot.slane %v1526, 1
        %v1528 = vadd.f32 %v1526, %v1527
        %v1529 = vsel %vm1403, %v1507, %v1528
        %1530 = vst [vmem:[%s275] sm:$0x3] %v1529
        %s1531 = sand.u32 %s103, 1
        %s1532 = scalar_lea.sflag [#allocation3], %s1531
        %s1533 = sand.u32 %s103, 1
        %s1534 = smul.addr %s1533, 32
        %s1535 = scalar_lea.vmem [#allocation2], %s1534
        %s1536 = sand.u32 %s27, 1
        %s1537 = scalar_lea.sflag [#allocation5], %s1536
        %s1538 = sand.u32 %s129, 1
        %s1539 = smul.addr %s1538, 2
        %s1540 = scalar_lea.vmem [#allocation4], %s1539
        %s1541 = sand.u32 %s27, 1
        %s1542 = scalar_lea.sflag [#allocation5], %s1541
        %s1543 = sand.u32 %s155, 1
        %s1544 = smul.addr %s1543, 32
        %s1545 = scalar_lea.vmem [#allocation6], %s1544
        %s1546 = sand.u32 %s181, 1
        %s1547 = scalar_lea.sflag [#allocation8], %s1546
        %s1548 = sand.u32 %s181, 1
        %s1549 = smul.addr %s1548, 2
        %s1550 = scalar_lea.vmem [#allocation7], %s1549
        // Predicated region
        $region33: #{tpu_custom_call.1} parent=31 // pred_check
          %p1551 = pneg %p113
        $region34: #{tpu_custom_call.1} parent=31 // pred_check_branch
          %1553 = sbr.rel (%p1551) target = $region36
        $region35: #{tpu_custom_call.1} parent=31 // pred_region
          %s1554 = smul.u32 8, %s27
          %1556 = vsyncadd %s1532, 0
          %s1557 = smul.addr %s1554, 4
          %s1558 = scalar_lea.hbm %s3, %s1557
          %s1559 = sshll.u32 %s1535, 4
          %s1560 = int_to_ptr.vmem [resolvable:$true] %s1559
          %s1561 = sshll.u32 %s1558, 4
          %s1562 = int_to_ptr.hbm [resolvable:$true] %s1561
          %1567 = dma.vmem_to_hbm [thread:$0]  %s1560, 512, %s1562, %s1532, 64, 64, 4
        $region36: #{tpu_custom_call.1} parent=31 // pred_fallthru
          _
        // Predicated region
        $region37: #{tpu_custom_call.1} parent=31 // pred_check
          %p1568 = pneg %p139
        $region38: #{tpu_custom_call.1} parent=31 // pred_check_branch
          %1570 = sbr.rel (%p1568) target = $region40
        $region39: #{tpu_custom_call.1} parent=31 // pred_region
          %1572 = vsyncadd %s1537, 0
          %s1573 = smul.addr %s27, 2
          %s1574 = scalar_lea.hbm %s4, %s1573
          %s1576 = sshll.u32 %s1540, 4
          %s1577 = int_to_ptr.vmem [resolvable:$true] %s1576
          %s1578 = sshll.u32 %s1574, 4
          %s1579 = int_to_ptr.hbm [resolvable:$true] %s1578
          %1581 = dma.vmem_to_hbm [thread:$0]  %s1577, 32, %s1579, %s1537
        $region40: #{tpu_custom_call.1} parent=31 // pred_fallthru
          _
        // Predicated region
        $region41: #{tpu_custom_call.1} parent=31 // pred_check
          %p1582 = pneg %p165
        $region42: #{tpu_custom_call.1} parent=31 // pred_check_branch
          %1584 = sbr.rel (%p1582) target = $region44
        $region43: #{tpu_custom_call.1} parent=31 // pred_region
          %s1585 = smul.u32 8, %s27
          %1587 = vsyncadd %s1542, 0
          %s1588 = smul.addr %s1585, 4
          %s1589 = scalar_lea.hbm %s5, %s1588
          %s1590 = sshll.u32 %s1545, 4
          %s1591 = int_to_ptr.vmem [resolvable:$true] %s1590
          %s1592 = sshll.u32 %s1589, 4
          %s1593 = int_to_ptr.hbm [resolvable:$true] %s1592
          %1598 = dma.vmem_to_hbm [thread:$0]  %s1591, 512, %s1593, %s1542, 64, 64, 4
        $region44: #{tpu_custom_call.1} parent=31 // pred_fallthru
          _
        // Predicated region
        $region45: #{tpu_custom_call.1} parent=31 // pred_check
          %p1599 = pneg %p191
        $region46: #{tpu_custom_call.1} parent=31 // pred_check_branch
          %1601 = sbr.rel (%p1599) target = $region48
        $region47: #{tpu_custom_call.1} parent=31 // pred_region
          %1603 = vsyncadd %s1547, 0
          %s1604 = smul.addr %s27, 2
          %s1605 = scalar_lea.hbm %s6, %s1604
          %s1607 = sshll.u32 %s1550, 4
          %s1608 = int_to_ptr.vmem [resolvable:$true] %s1607
          %s1609 = sshll.u32 %s1605, 4
          %s1610 = int_to_ptr.hbm [resolvable:$true] %s1609
          %1612 = dma.vmem_to_hbm [thread:$0]  %s1608, 32, %s1610, %s1547
        $region48: #{tpu_custom_call.1} parent=31 // pred_fallthru
          _
      $region32: #{tpu_custom_call.1} parent=5 // pred_fallthru
        _
      %p1613 = scmp.le.s32.totalorder 2, %s22
      // Predicated region
      $region49: #{tpu_custom_call.1} parent=5 // pred_check
        %p1614 = pneg %p1613
      $region50: #{tpu_custom_call.1} parent=5 // pred_check_branch
        %1616 = sbr.rel (%p1614) target = $region52
      $region51: #{tpu_custom_call.1} parent=5 // pred_region
        %s1617 = ssub.s32 %s22, 2
        // Predicated region
        $region53: #{tpu_custom_call.1} parent=51 // pred_check
          %p1618 = pneg %p119
        $region54: #{tpu_custom_call.1} parent=51 // pred_check_branch
          %1620 = sbr.rel (%p1618) target = $region56
        $region55: #{tpu_custom_call.1} parent=51 // pred_region
          %s1621 = sand.u32 %s104, 1
          %s1622 = scalar_lea.sflag [#allocation3], %s1621
          %s1623 = sand.u32 %s104, 1
          %s1624 = smul.addr %s1623, 32
          %s1625 = scalar_lea.vmem [#allocation2], %s1624
          %1627 = dma.done %s1622, 512
        $region56: #{tpu_custom_call.1} parent=51 // pred_fallthru
          _
        // Predicated region
        $region57: #{tpu_custom_call.1} parent=51 // pred_check
          %p1628 = pneg %p145
        $region58: #{tpu_custom_call.1} parent=51 // pred_check_branch
          %1630 = sbr.rel (%p1628) target = $region60
        $region59: #{tpu_custom_call.1} parent=51 // pred_region
          %s1631 = sand.u32 %s28, 1
          %s1632 = scalar_lea.sflag [#allocation5], %s1631
          %s1633 = sand.u32 %s130, 1
          %s1634 = smul.addr %s1633, 2
          %s1635 = scalar_lea.vmem [#allocation4], %s1634
          %1637 = dma.done %s1632, 32
        $region60: #{tpu_custom_call.1} parent=51 // pred_fallthru
          _
        // Predicated region
        $region61: #{tpu_custom_call.1} parent=51 // pred_check
          %p1638 = pneg %p171
        $region62: #{tpu_custom_call.1} parent=51 // pred_check_branch
          %1640 = sbr.rel (%p1638) target = $region64
        $region63: #{tpu_custom_call.1} parent=51 // pred_region
          %s1641 = sand.u32 %s28, 1
          %s1642 = scalar_lea.sflag [#allocation5], %s1641
          %s1643 = sand.u32 %s156, 1
          %s1644 = smul.addr %s1643, 32
          %s1645 = scalar_lea.vmem [#allocation6], %s1644
          %1647 = dma.done %s1642, 512
        $region64: #{tpu_custom_call.1} parent=51 // pred_fallthru
          _
        // Predicated region
        $region65: #{tpu_custom_call.1} parent=51 // pred_check
          %p1648 = pneg %p197
        $region66: #{tpu_custom_call.1} parent=51 // pred_check_branch
          %1650 = sbr.rel (%p1648) target = $region68
        $region67: #{tpu_custom_call.1} parent=51 // pred_region
          %s1651 = sand.u32 %s182, 1
          %s1652 = scalar_lea.sflag [#allocation8], %s1651
          %s1653 = sand.u32 %s182, 1
          %s1654 = smul.addr %s1653, 2
          %s1655 = scalar_lea.vmem [#allocation7], %s1654
          %1657 = dma.done %s1652, 32
        $region68: #{tpu_custom_call.1} parent=51 // pred_fallthru
          _
      $region52: #{tpu_custom_call.1} parent=5 // pred_fallthru
        _
    $region6: #{tpu_custom_call.1} parent=1 // loop_footer
      %s26 = sadd.s32 1, %s22
    $region7: #{tpu_custom_call.1} parent=1 // loop_footer_branch
      %21 = sbr.rel target = $region3
    $region8: #{tpu_custom_call.1} parent=1 // loop_exit
      _
    %1658 = vsyncpa [#allocation3], 1
    %s1659 = scalar_lea.sflag [#allocation3], 1
    %1660 = vsyncpa %s1659, 1
    %1661 = vsyncpa [#allocation5], 1
    %s1662 = scalar_lea.sflag [#allocation5], 1
    %1663 = vsyncpa %s1662, 1
    %1664 = vsyncpa [#allocation8], 1
    %s1665 = scalar_lea.sflag [#allocation8], 1
    %1666 = vsyncpa %s1665, 1

</llo_original>
